<compile_context>
chip_gen: v7x
topology: tpu7x:2x2x1
jax: 0.10.0
libtpu: 0.0.40
codegen_flags: <defaults>
</compile_context>

<pallas_src>
import functools

import jax
import jax.numpy as jnp
import numpy as np
from jax import lax
from jax.experimental import pallas as pl
from jax.experimental.pallas import tpu as pltpu

NEG_SLOPE = 0.2
CIN_PAD = 8  # pad the 3 RGB input channels up to one sublane tile (done host-side)


def _denoise_kernel(x_ref, mask_ref, w1_ref, b1_ref, w2_ref, b2_ref,
                    w3_ref, b3_ref, o_ref, *, W):
    """Fused conv3x3+LReLU -> conv3x3+LReLU -> conv1x1 for B_TILE images.

    Activations are (channels, B_TILE*H*W): channels on sublanes, images
    back-to-back on lanes.  A 3x3 'same' conv = one im2col matmul: 9
    lane-rolled copies of the activation (taps) stacked along sublanes; taps
    that would read outside their image are zeroed with precomputed masks
    (per-image periodic), which is exactly the zero-padding semantics even
    when a roll bleeds into the neighbouring image.
    """
    f32 = jnp.float32
    bf16 = jnp.bfloat16

    x = x_ref[...].astype(f32)          # (CIN_PAD, BL)
    masks = mask_ref[...]               # (8, BL) f32 {0,1}, precomputed host-side

    def conv3x3_lrelu(a, w_ref, b_ref):
        # a: (C, BL) f32; w_ref: (Cout, 9*C) bf16 with K ordered as (dy, dx, c).
        pieces = []
        t = 0
        for dy in range(3):
            for dx in range(3):
                off = (dy - 1) * W + (dx - 1)                 # flat tap offset
                s = a if off == 0 else jnp.roll(a, -off, axis=1)
                if dy == 1 and dx == 1:
                    pieces.append(s.astype(bf16))             # centre tap always valid
                else:
                    pieces.append((s * masks[t:t + 1, :]).astype(bf16))
                    t += 1
        patches = jnp.concatenate(pieces, axis=0)             # (9*C, BL) bf16 im2col
        y = jnp.dot(w_ref[...], patches,
                    preferred_element_type=f32) + b_ref[...]  # f32 accumulate + bias
        return jnp.where(y >= 0, y, NEG_SLOPE * y)            # LeakyReLU(0.2), f32

    h = conv3x3_lrelu(x, w1_ref, b1_ref)                      # (48, BL)
    h = conv3x3_lrelu(h, w2_ref, b2_ref)                      # (48, BL)
    y = jnp.dot(w3_ref[...], h.astype(bf16),
                preferred_element_type=f32) + b3_ref[...]     # 1x1 conv, (3, BL)
    o_ref[...] = y.astype(o_ref.dtype)                        # lane-dense store


def _im2col_weights(w_oihw, cin_pad=None):
    """OIHW (Cout, Cin, 3, 3) -> (Cout, 9*Cin) with K ordered as (dy, dx, c)."""
    cout, cin, kh, kw = w_oihw.shape
    if cin_pad is not None and cin_pad > cin:
        w_oihw = jnp.pad(w_oihw, ((0, 0), (0, cin_pad - cin), (0, 0), (0, 0)))
        cin = cin_pad
    return jnp.transpose(w_oihw, (0, 2, 3, 1)).reshape(cout, kh * kw * cin)


def prepare_params(params):
    """One-time re-layout of OIHW conv params into the kernel's matmul format.

    Matmul weights are stored bf16 (MXU-native); biases stay f32.
    """
    bf16 = jnp.bfloat16
    return dict(
        w1=_im2col_weights(params["w1"], cin_pad=CIN_PAD).astype(bf16),  # (48, 72)
        w2=_im2col_weights(params["w2"]).astype(bf16),                   # (48, 432)
        w3=params["w3"].reshape(params["w3"].shape[0], -1).astype(bf16), # (3, 48)
        b1=params["b1"].reshape(-1, 1).astype(jnp.float32),              # (48, 1)
        b2=params["b2"].reshape(-1, 1).astype(jnp.float32),              # (48, 1)
        b3=params["b3"].reshape(-1, 1).astype(jnp.float32),              # (3, 1)
    )


def _make_tap_masks(H, W, b_tile):
    """(8, b_tile*H*W) {0,1} masks for the 8 non-centre taps, (dy, dx) order."""
    yy, xx = np.meshgrid(np.arange(H), np.arange(W), indexing="ij")
    yy = yy.reshape(-1)
    xx = xx.reshape(-1)
    rows = []
    for dy in range(3):
        for dx in range(3):
            if dy == 1 and dx == 1:
                continue
            ok = ((yy + dy - 1 >= 0) & (yy + dy - 1 < H) &
                  (xx + dx - 1 >= 0) & (xx + dx - 1 < W))
            rows.append(ok.astype(np.float32))
    m = np.stack(rows, axis=0)              # (8, L)
    return np.tile(m, (1, b_tile))          # (8, b_tile*L), per-image periodic


def _pick_batch_tile(n, num_cores, L):
    """Images per grid step.  num_cores=1 => whole batch in one step."""
    if num_cores <= 1 or n <= 1:
        return n
    target = max(1, -(-n // num_cores))     # cdiv(n, num_cores)
    for bt in range(target, 0, -1):
        if n % bt == 0:
            # lane constraint: non-final blocks must be a multiple of 128 lanes
            if n // bt == 1 or (bt * L) % 128 == 0:
                return bt
    return n


def denoise1_forward(x_nchw, prepped, *, num_cores=1):
    """Fused Pallas forward pass.  Input/output NCHW, like the PyTorch module.

    `num_cores`: grid steps target (2 on v7x megacore, 1 on v5e/v6e).
    """
    N, cin, H, W = x_nchw.shape
    L = H * W
    w1, w2, w3 = prepped["w1"], prepped["w2"], prepped["w3"]
    b1, b2, b3 = prepped["b1"], prepped["b2"], prepped["b3"]
    cout = w3.shape[0]

    b_tile = _pick_batch_tile(N, num_cores, L)
    grid = (N // b_tile,)
    BL = b_tile * L

    # Host-side layout plumbing (tiny vs. the conv work):
    #   NCHW -> (C, N*L) channels-on-sublanes / lane-dense slab, pad C 3 -> 8.
    x_cl = jnp.transpose(x_nchw, (1, 0, 2, 3)).reshape(cin, N * L)
    x_cl = jnp.pad(x_cl, ((0, CIN_PAD - cin), (0, 0)))           # (8, N*L)

    masks = jnp.asarray(_make_tap_masks(H, W, b_tile))           # (8, BL) constant

    out_cl = pl.pallas_call(
        functools.partial(_denoise_kernel, W=W),
        out_shape=jax.ShapeDtypeStruct((cout, N * L), x_nchw.dtype),
        grid_spec=pltpu.PrefetchScalarGridSpec(
            num_scalar_prefetch=0,
            grid=grid,
            in_specs=[
                pl.BlockSpec((CIN_PAD, BL), lambda g: (0, g)),   # input slab chunk
                pl.BlockSpec(masks.shape, lambda g: (0, 0)),     # tap masks (const)
                pl.BlockSpec(w1.shape, lambda g: (0, 0)),
                pl.BlockSpec(b1.shape, lambda g: (0, 0)),
                pl.BlockSpec(w2.shape, lambda g: (0, 0)),
                pl.BlockSpec(b2.shape, lambda g: (0, 0)),
                pl.BlockSpec(w3.shape, lambda g: (0, 0)),
                pl.BlockSpec(b3.shape, lambda g: (0, 0)),
            ],
            out_specs=pl.BlockSpec((cout, BL), lambda g: (0, g)),
        ),
        compiler_params=pltpu.CompilerParams(
            dimension_semantics=("parallel",)),
    )(x_cl, masks, w1, b1, w2, b2, w3, b3)

    # (3, N*L) -> NCHW
    return jnp.transpose(out_cl.reshape(cout, N, H, W), (1, 0, 2, 3))


def reference_forward(x_nchw, params):
    """Pure-JAX reference (lax conv, highest precision) for correctness checking."""
    def conv(x, w, b, pad):
        y = lax.conv_general_dilated(
            x, w, window_strides=(1, 1), padding=[(pad, pad), (pad, pad)],
            dimension_numbers=("NCHW", "OIHW", "NCHW"),
            precision=lax.Precision.HIGHEST)
        return y + b.reshape(1, -1, 1, 1)

    def lrelu(v):
        return jnp.where(v >= 0, v, NEG_SLOPE * v)

    x = lrelu(conv(x_nchw, params["w1"], params["b1"], 1))
    x = lrelu(conv(x, params["w2"], params["b2"], 1))
    return conv(x, params["w3"], params["b3"], 0)


def init_params(key, chan_embed=48):
    """Deterministic init matching PyTorch Conv2d default (uniform +-1/sqrt(fan_in)), OIHW."""
    ks = jax.random.split(key, 6)

    def conv_init(kw_key, kb_key, cout, cin, kh, kw):
        fan_in = cin * kh * kw
        bound = 1.0 / np.sqrt(fan_in)
        w = jax.random.uniform(kw_key, (cout, cin, kh, kw), jnp.float32,
                               minval=-bound, maxval=bound)
        b = jax.random.uniform(kb_key, (cout,), jnp.float32,
                               minval=-bound, maxval=bound)
        return w, b

    w1, b1 = conv_init(ks[0], ks[1], chan_embed, 3, 3, 3)
    w2, b2 = conv_init(ks[2], ks[3], chan_embed, chan_embed, 3, 3)
    w3, b3 = conv_init(ks[4], ks[5], 3, chan_embed, 1, 1)
    return dict(w1=w1, b1=b1, w2=w2, b2=b2, w3=w3, b3=b3)


if __name__ == "__main__":
    key = jax.random.PRNGKey(0)
    kx, kp = jax.random.split(key)

    # Small shapes consistent with the module: batch=2, 3 channels, 16x16 spatial (NCHW).
    x = jax.random.normal(kx, (2, 3, 16, 16), jnp.float32)
    params = init_params(kp, chan_embed=48)
    prepped = prepare_params(params)        # one-time weight re-layout (outside the hot path)

    fwd = jax.jit(denoise1_forward)         # num_cores=1 default (set 2 on v7x)
    out = jax.block_until_ready(fwd(x, prepped))

    assert out.shape == (2, 3, 16, 16)
    ref = reference_forward(x, params)
    # bf16 MXU operands with f32 accumulation: expect ~1e-3 level deviation from
    # the fp32 lax reference after three layers; 1e-2 tolerance leaves headroom.
    np.testing.assert_allclose(np.asarray(out), np.asarray(ref),
                               rtol=1e-2, atol=1e-2)
    print("KERNEL_OK")
</pallas_src>

<mosaic_0001>
module attributes {stable_mosaic.version = 11 : i64} {
  func.func @_denoise_kernel(%arg0: i32, %arg1: memref<8x512xf32, #tpu.memory_space<vmem>>, %arg2: memref<8x512xf32, #tpu.memory_space<vmem>>, %arg3: memref<48x72xbf16, #tpu.memory_space<vmem>>, %arg4: memref<48x1xf32, #tpu.memory_space<vmem>>, %arg5: memref<48x432xbf16, #tpu.memory_space<vmem>>, %arg6: memref<48x1xf32, #tpu.memory_space<vmem>>, %arg7: memref<3x48xbf16, #tpu.memory_space<vmem>>, %arg8: memref<3x1xf32, #tpu.memory_space<vmem>>, %arg9: memref<3x512xf32, #tpu.memory_space<vmem>>) attributes {dimension_semantics = [#tpu.dimension_semantics<parallel>], iteration_bounds = array<i64: 1>, scalar_prefetch = 0 : i64, scratch_operands = 0 : i64, tpu.core_type = #tpu.core_type<tc>, window_params = [{transform_indices = @transform_0, window_bounds = array<i64: 8, 512>}, {pipeline_mode = #tpu.pipeline_mode<synchronous>, transform_indices = @transform_1, window_bounds = array<i64: 8, 512>}, {pipeline_mode = #tpu.pipeline_mode<synchronous>, transform_indices = @transform_2, window_bounds = array<i64: 48, 72>}, {pipeline_mode = #tpu.pipeline_mode<synchronous>, transform_indices = @transform_3, window_bounds = array<i64: 48, 1>}, {pipeline_mode = #tpu.pipeline_mode<synchronous>, transform_indices = @transform_4, window_bounds = array<i64: 48, 432>}, {pipeline_mode = #tpu.pipeline_mode<synchronous>, transform_indices = @transform_5, window_bounds = array<i64: 48, 1>}, {pipeline_mode = #tpu.pipeline_mode<synchronous>, transform_indices = @transform_6, window_bounds = array<i64: 3, 48>}, {pipeline_mode = #tpu.pipeline_mode<synchronous>, transform_indices = @transform_7, window_bounds = array<i64: 3, 1>}, {transform_indices = @transform_8, window_bounds = array<i64: 3, 512>}]} {
    %c0 = arith.constant 0 : index
    %c0_0 = arith.constant 0 : index
    %0 = vector.load %arg1[%c0, %c0_0] : memref<8x512xf32, #tpu.memory_space<vmem>>, vector<8x512xf32>
    %c0_1 = arith.constant 0 : index
    %c0_2 = arith.constant 0 : index
    %1 = vector.load %arg2[%c0_1, %c0_2] : memref<8x512xf32, #tpu.memory_space<vmem>>, vector<8x512xf32>
    %2 = vector.extract_strided_slice %0 {offsets = [0, 495], sizes = [8, 17], strides = [1, 1]} : vector<8x512xf32> to vector<8x17xf32>
    %3 = vector.extract_strided_slice %0 {offsets = [0, 0], sizes = [8, 495], strides = [1, 1]} : vector<8x512xf32> to vector<8x495xf32>
    %4 = tpu.concatenate %2, %3 in 1 : vector<8x17xf32>, vector<8x495xf32> -> vector<8x512xf32>
    %5 = vector.extract_strided_slice %1 {offsets = [0, 0], sizes = [1, 512], strides = [1, 1]} : vector<8x512xf32> to vector<1x512xf32>
    %6 = vector.broadcast %5 : vector<1x512xf32> to vector<8x512xf32>
    %7 = arith.mulf %4, %6 : vector<8x512xf32>
    %8 = arith.truncf %7 : vector<8x512xf32> to vector<8x512xbf16>
    %9 = vector.extract_strided_slice %0 {offsets = [0, 496], sizes = [8, 16], strides = [1, 1]} : vector<8x512xf32> to vector<8x16xf32>
    %10 = vector.extract_strided_slice %0 {offsets = [0, 0], sizes = [8, 496], strides = [1, 1]} : vector<8x512xf32> to vector<8x496xf32>
    %11 = tpu.concatenate %9, %10 in 1 : vector<8x16xf32>, vector<8x496xf32> -> vector<8x512xf32>
    %12 = vector.extract_strided_slice %1 {offsets = [1, 0], sizes = [1, 512], strides = [1, 1]} : vector<8x512xf32> to vector<1x512xf32>
    %13 = vector.broadcast %12 : vector<1x512xf32> to vector<8x512xf32>
    %14 = arith.mulf %11, %13 : vector<8x512xf32>
    %15 = arith.truncf %14 : vector<8x512xf32> to vector<8x512xbf16>
    %16 = vector.extract_strided_slice %0 {offsets = [0, 497], sizes = [8, 15], strides = [1, 1]} : vector<8x512xf32> to vector<8x15xf32>
    %17 = vector.extract_strided_slice %0 {offsets = [0, 0], sizes = [8, 497], strides = [1, 1]} : vector<8x512xf32> to vector<8x497xf32>
    %18 = tpu.concatenate %16, %17 in 1 : vector<8x15xf32>, vector<8x497xf32> -> vector<8x512xf32>
    %19 = vector.extract_strided_slice %1 {offsets = [2, 0], sizes = [1, 512], strides = [1, 1]} : vector<8x512xf32> to vector<1x512xf32>
    %20 = vector.broadcast %19 : vector<1x512xf32> to vector<8x512xf32>
    %21 = arith.mulf %18, %20 : vector<8x512xf32>
    %22 = arith.truncf %21 : vector<8x512xf32> to vector<8x512xbf16>
    %23 = vector.extract_strided_slice %0 {offsets = [0, 511], sizes = [8, 1], strides = [1, 1]} : vector<8x512xf32> to vector<8x1xf32>
    %24 = vector.extract_strided_slice %0 {offsets = [0, 0], sizes = [8, 511], strides = [1, 1]} : vector<8x512xf32> to vector<8x511xf32>
    %25 = tpu.concatenate %23, %24 in 1 : vector<8x1xf32>, vector<8x511xf32> -> vector<8x512xf32>
    %26 = vector.extract_strided_slice %1 {offsets = [3, 0], sizes = [1, 512], strides = [1, 1]} : vector<8x512xf32> to vector<1x512xf32>
    %27 = vector.broadcast %26 : vector<1x512xf32> to vector<8x512xf32>
    %28 = arith.mulf %25, %27 : vector<8x512xf32>
    %29 = arith.truncf %28 : vector<8x512xf32> to vector<8x512xbf16>
    %30 = arith.truncf %0 : vector<8x512xf32> to vector<8x512xbf16>
    %31 = vector.extract_strided_slice %0 {offsets = [0, 1], sizes = [8, 511], strides = [1, 1]} : vector<8x512xf32> to vector<8x511xf32>
    %32 = vector.extract_strided_slice %0 {offsets = [0, 0], sizes = [8, 1], strides = [1, 1]} : vector<8x512xf32> to vector<8x1xf32>
    %33 = tpu.concatenate %31, %32 in 1 : vector<8x511xf32>, vector<8x1xf32> -> vector<8x512xf32>
    %34 = vector.extract_strided_slice %1 {offsets = [4, 0], sizes = [1, 512], strides = [1, 1]} : vector<8x512xf32> to vector<1x512xf32>
    %35 = vector.broadcast %34 : vector<1x512xf32> to vector<8x512xf32>
    %36 = arith.mulf %33, %35 : vector<8x512xf32>
    %37 = arith.truncf %36 : vector<8x512xf32> to vector<8x512xbf16>
    %38 = vector.extract_strided_slice %0 {offsets = [0, 15], sizes = [8, 497], strides = [1, 1]} : vector<8x512xf32> to vector<8x497xf32>
    %39 = vector.extract_strided_slice %0 {offsets = [0, 0], sizes = [8, 15], strides = [1, 1]} : vector<8x512xf32> to vector<8x15xf32>
    %40 = tpu.concatenate %38, %39 in 1 : vector<8x497xf32>, vector<8x15xf32> -> vector<8x512xf32>
    %41 = vector.extract_strided_slice %1 {offsets = [5, 0], sizes = [1, 512], strides = [1, 1]} : vector<8x512xf32> to vector<1x512xf32>
    %42 = vector.broadcast %41 : vector<1x512xf32> to vector<8x512xf32>
    %43 = arith.mulf %40, %42 : vector<8x512xf32>
    %44 = arith.truncf %43 : vector<8x512xf32> to vector<8x512xbf16>
    %45 = vector.extract_strided_slice %0 {offsets = [0, 16], sizes = [8, 496], strides = [1, 1]} : vector<8x512xf32> to vector<8x496xf32>
    %46 = vector.extract_strided_slice %0 {offsets = [0, 0], sizes = [8, 16], strides = [1, 1]} : vector<8x512xf32> to vector<8x16xf32>
    %47 = tpu.concatenate %45, %46 in 1 : vector<8x496xf32>, vector<8x16xf32> -> vector<8x512xf32>
    %48 = vector.extract_strided_slice %1 {offsets = [6, 0], sizes = [1, 512], strides = [1, 1]} : vector<8x512xf32> to vector<1x512xf32>
    %49 = vector.broadcast %48 : vector<1x512xf32> to vector<8x512xf32>
    %50 = arith.mulf %47, %49 : vector<8x512xf32>
    %51 = arith.truncf %50 : vector<8x512xf32> to vector<8x512xbf16>
    %52 = vector.extract_strided_slice %0 {offsets = [0, 17], sizes = [8, 495], strides = [1, 1]} : vector<8x512xf32> to vector<8x495xf32>
    %53 = vector.extract_strided_slice %0 {offsets = [0, 0], sizes = [8, 17], strides = [1, 1]} : vector<8x512xf32> to vector<8x17xf32>
    %54 = tpu.concatenate %52, %53 in 1 : vector<8x495xf32>, vector<8x17xf32> -> vector<8x512xf32>
    %55 = vector.extract_strided_slice %1 {offsets = [7, 0], sizes = [1, 512], strides = [1, 1]} : vector<8x512xf32> to vector<1x512xf32>
    %56 = vector.broadcast %55 : vector<1x512xf32> to vector<8x512xf32>
    %57 = arith.mulf %54, %56 : vector<8x512xf32>
    %58 = arith.truncf %57 : vector<8x512xf32> to vector<8x512xbf16>
    %59 = tpu.concatenate %8, %15, %22, %29, %30, %37, %44, %51, %58 in 0 : vector<8x512xbf16>, vector<8x512xbf16>, vector<8x512xbf16>, vector<8x512xbf16>, vector<8x512xbf16>, vector<8x512xbf16>, vector<8x512xbf16>, vector<8x512xbf16>, vector<8x512xbf16> -> vector<72x512xbf16>
    %c0_3 = arith.constant 0 : index
    %c0_4 = arith.constant 0 : index
    %60 = vector.load %arg3[%c0_3, %c0_4] : memref<48x72xbf16, #tpu.memory_space<vmem>>, vector<48x72xbf16>
    %cst = arith.constant dense<0.000000e+00> : vector<48x512xf32>
    %61 = tpu.matmul %60, %59, %cst {dimension_numbers = #tpu.dot_dimension_numbers<[1], [0], [0], [1], [0, 0, 1, 1], [], []>} : vector<48x72xbf16>, vector<72x512xbf16>, vector<48x512xf32> -> vector<48x512xf32>
    %c0_5 = arith.constant 0 : index
    %c0_6 = arith.constant 0 : index
    %62 = vector.load %arg4[%c0_5, %c0_6] : memref<48x1xf32, #tpu.memory_space<vmem>>, vector<48x1xf32>
    %63 = vector.broadcast %62 : vector<48x1xf32> to vector<48x512xf32>
    %64 = arith.addf %61, %63 : vector<48x512xf32>
    %cst_7 = arith.constant 0.000000e+00 : f32
    %65 = vector.broadcast %cst_7 : f32 to vector<48x512xf32>
    %66 = arith.cmpf oge, %64, %65 : vector<48x512xf32>
    %cst_8 = arith.constant 2.000000e-01 : f32
    %67 = vector.broadcast %cst_8 : f32 to vector<48x512xf32>
    %68 = arith.mulf %67, %64 : vector<48x512xf32>
    %69 = arith.select %66, %64, %68 : vector<48x512xi1>, vector<48x512xf32>
    %70 = vector.extract_strided_slice %69 {offsets = [0, 495], sizes = [48, 17], strides = [1, 1]} : vector<48x512xf32> to vector<48x17xf32>
    %71 = vector.extract_strided_slice %69 {offsets = [0, 0], sizes = [48, 495], strides = [1, 1]} : vector<48x512xf32> to vector<48x495xf32>
    %72 = tpu.concatenate %70, %71 in 1 : vector<48x17xf32>, vector<48x495xf32> -> vector<48x512xf32>
    %73 = vector.extract_strided_slice %1 {offsets = [0, 0], sizes = [1, 512], strides = [1, 1]} : vector<8x512xf32> to vector<1x512xf32>
    %74 = vector.broadcast %73 : vector<1x512xf32> to vector<48x512xf32>
    %75 = arith.mulf %72, %74 : vector<48x512xf32>
    %76 = arith.truncf %75 : vector<48x512xf32> to vector<48x512xbf16>
    %77 = vector.extract_strided_slice %69 {offsets = [0, 496], sizes = [48, 16], strides = [1, 1]} : vector<48x512xf32> to vector<48x16xf32>
    %78 = vector.extract_strided_slice %69 {offsets = [0, 0], sizes = [48, 496], strides = [1, 1]} : vector<48x512xf32> to vector<48x496xf32>
    %79 = tpu.concatenate %77, %78 in 1 : vector<48x16xf32>, vector<48x496xf32> -> vector<48x512xf32>
    %80 = vector.extract_strided_slice %1 {offsets = [1, 0], sizes = [1, 512], strides = [1, 1]} : vector<8x512xf32> to vector<1x512xf32>
    %81 = vector.broadcast %80 : vector<1x512xf32> to vector<48x512xf32>
    %82 = arith.mulf %79, %81 : vector<48x512xf32>
    %83 = arith.truncf %82 : vector<48x512xf32> to vector<48x512xbf16>
    %84 = vector.extract_strided_slice %69 {offsets = [0, 497], sizes = [48, 15], strides = [1, 1]} : vector<48x512xf32> to vector<48x15xf32>
    %85 = vector.extract_strided_slice %69 {offsets = [0, 0], sizes = [48, 497], strides = [1, 1]} : vector<48x512xf32> to vector<48x497xf32>
    %86 = tpu.concatenate %84, %85 in 1 : vector<48x15xf32>, vector<48x497xf32> -> vector<48x512xf32>
    %87 = vector.extract_strided_slice %1 {offsets = [2, 0], sizes = [1, 512], strides = [1, 1]} : vector<8x512xf32> to vector<1x512xf32>
    %88 = vector.broadcast %87 : vector<1x512xf32> to vector<48x512xf32>
    %89 = arith.mulf %86, %88 : vector<48x512xf32>
    %90 = arith.truncf %89 : vector<48x512xf32> to vector<48x512xbf16>
    %91 = vector.extract_strided_slice %69 {offsets = [0, 511], sizes = [48, 1], strides = [1, 1]} : vector<48x512xf32> to vector<48x1xf32>
    %92 = vector.extract_strided_slice %69 {offsets = [0, 0], sizes = [48, 511], strides = [1, 1]} : vector<48x512xf32> to vector<48x511xf32>
    %93 = tpu.concatenate %91, %92 in 1 : vector<48x1xf32>, vector<48x511xf32> -> vector<48x512xf32>
    %94 = vector.extract_strided_slice %1 {offsets = [3, 0], sizes = [1, 512], strides = [1, 1]} : vector<8x512xf32> to vector<1x512xf32>
    %95 = vector.broadcast %94 : vector<1x512xf32> to vector<48x512xf32>
    %96 = arith.mulf %93, %95 : vector<48x512xf32>
    %97 = arith.truncf %96 : vector<48x512xf32> to vector<48x512xbf16>
    %98 = arith.truncf %69 : vector<48x512xf32> to vector<48x512xbf16>
    %99 = vector.extract_strided_slice %69 {offsets = [0, 1], sizes = [48, 511], strides = [1, 1]} : vector<48x512xf32> to vector<48x511xf32>
    %100 = vector.extract_strided_slice %69 {offsets = [0, 0], sizes = [48, 1], strides = [1, 1]} : vector<48x512xf32> to vector<48x1xf32>
    %101 = tpu.concatenate %99, %100 in 1 : vector<48x511xf32>, vector<48x1xf32> -> vector<48x512xf32>
    %102 = vector.extract_strided_slice %1 {offsets = [4, 0], sizes = [1, 512], strides = [1, 1]} : vector<8x512xf32> to vector<1x512xf32>
    %103 = vector.broadcast %102 : vector<1x512xf32> to vector<48x512xf32>
    %104 = arith.mulf %101, %103 : vector<48x512xf32>
    %105 = arith.truncf %104 : vector<48x512xf32> to vector<48x512xbf16>
    %106 = vector.extract_strided_slice %69 {offsets = [0, 15], sizes = [48, 497], strides = [1, 1]} : vector<48x512xf32> to vector<48x497xf32>
    %107 = vector.extract_strided_slice %69 {offsets = [0, 0], sizes = [48, 15], strides = [1, 1]} : vector<48x512xf32> to vector<48x15xf32>
    %108 = tpu.concatenate %106, %107 in 1 : vector<48x497xf32>, vector<48x15xf32> -> vector<48x512xf32>
    %109 = vector.extract_strided_slice %1 {offsets = [5, 0], sizes = [1, 512], strides = [1, 1]} : vector<8x512xf32> to vector<1x512xf32>
    %110 = vector.broadcast %109 : vector<1x512xf32> to vector<48x512xf32>
    %111 = arith.mulf %108, %110 : vector<48x512xf32>
    %112 = arith.truncf %111 : vector<48x512xf32> to vector<48x512xbf16>
    %113 = vector.extract_strided_slice %69 {offsets = [0, 16], sizes = [48, 496], strides = [1, 1]} : vector<48x512xf32> to vector<48x496xf32>
    %114 = vector.extract_strided_slice %69 {offsets = [0, 0], sizes = [48, 16], strides = [1, 1]} : vector<48x512xf32> to vector<48x16xf32>
    %115 = tpu.concatenate %113, %114 in 1 : vector<48x496xf32>, vector<48x16xf32> -> vector<48x512xf32>
    %116 = vector.extract_strided_slice %1 {offsets = [6, 0], sizes = [1, 512], strides = [1, 1]} : vector<8x512xf32> to vector<1x512xf32>
    %117 = vector.broadcast %116 : vector<1x512xf32> to vector<48x512xf32>
    %118 = arith.mulf %115, %117 : vector<48x512xf32>
    %119 = arith.truncf %118 : vector<48x512xf32> to vector<48x512xbf16>
    %120 = vector.extract_strided_slice %69 {offsets = [0, 17], sizes = [48, 495], strides = [1, 1]} : vector<48x512xf32> to vector<48x495xf32>
    %121 = vector.extract_strided_slice %69 {offsets = [0, 0], sizes = [48, 17], strides = [1, 1]} : vector<48x512xf32> to vector<48x17xf32>
    %122 = tpu.concatenate %120, %121 in 1 : vector<48x495xf32>, vector<48x17xf32> -> vector<48x512xf32>
    %123 = vector.extract_strided_slice %1 {offsets = [7, 0], sizes = [1, 512], strides = [1, 1]} : vector<8x512xf32> to vector<1x512xf32>
    %124 = vector.broadcast %123 : vector<1x512xf32> to vector<48x512xf32>
    %125 = arith.mulf %122, %124 : vector<48x512xf32>
    %126 = arith.truncf %125 : vector<48x512xf32> to vector<48x512xbf16>
    %127 = tpu.concatenate %76, %83, %90, %97, %98, %105, %112, %119, %126 in 0 : vector<48x512xbf16>, vector<48x512xbf16>, vector<48x512xbf16>, vector<48x512xbf16>, vector<48x512xbf16>, vector<48x512xbf16>, vector<48x512xbf16>, vector<48x512xbf16>, vector<48x512xbf16> -> vector<432x512xbf16>
    %c0_9 = arith.constant 0 : index
    %c0_10 = arith.constant 0 : index
    %128 = vector.load %arg5[%c0_9, %c0_10] : memref<48x432xbf16, #tpu.memory_space<vmem>>, vector<48x432xbf16>
    %cst_11 = arith.constant dense<0.000000e+00> : vector<48x512xf32>
    %129 = tpu.matmul %128, %127, %cst_11 {dimension_numbers = #tpu.dot_dimension_numbers<[1], [0], [0], [1], [0, 0, 1, 1], [], []>} : vector<48x432xbf16>, vector<432x512xbf16>, vector<48x512xf32> -> vector<48x512xf32>
    %c0_12 = arith.constant 0 : index
    %c0_13 = arith.constant 0 : index
    %130 = vector.load %arg6[%c0_12, %c0_13] : memref<48x1xf32, #tpu.memory_space<vmem>>, vector<48x1xf32>
    %131 = vector.broadcast %130 : vector<48x1xf32> to vector<48x512xf32>
    %132 = arith.addf %129, %131 : vector<48x512xf32>
    %cst_14 = arith.constant 0.000000e+00 : f32
    %133 = vector.broadcast %cst_14 : f32 to vector<48x512xf32>
    %134 = arith.cmpf oge, %132, %133 : vector<48x512xf32>
    %cst_15 = arith.constant 2.000000e-01 : f32
    %135 = vector.broadcast %cst_15 : f32 to vector<48x512xf32>
    %136 = arith.mulf %135, %132 : vector<48x512xf32>
    %137 = arith.select %134, %132, %136 : vector<48x512xi1>, vector<48x512xf32>
    %c0_16 = arith.constant 0 : index
    %c0_17 = arith.constant 0 : index
    %138 = vector.load %arg7[%c0_16, %c0_17] : memref<3x48xbf16, #tpu.memory_space<vmem>>, vector<3x48xbf16>
    %139 = arith.truncf %137 : vector<48x512xf32> to vector<48x512xbf16>
    %cst_18 = arith.constant dense<0.000000e+00> : vector<3x512xf32>
    %140 = tpu.matmul %138, %139, %cst_18 {dimension_numbers = #tpu.dot_dimension_numbers<[1], [0], [0], [1], [0, 0, 1, 1], [], []>} : vector<3x48xbf16>, vector<48x512xbf16>, vector<3x512xf32> -> vector<3x512xf32>
    %c0_19 = arith.constant 0 : index
    %c0_20 = arith.constant 0 : index
    %141 = vector.load %arg8[%c0_19, %c0_20] : memref<3x1xf32, #tpu.memory_space<vmem>>, vector<3x1xf32>
    %142 = vector.broadcast %141 : vector<3x1xf32> to vector<3x512xf32>
    %143 = arith.addf %140, %142 : vector<3x512xf32>
    %c0_21 = arith.constant 0 : index
    %c0_22 = arith.constant 0 : index
    %144 = vector.load %arg9[%c0_21, %c0_22] : memref<3x512xf32, #tpu.memory_space<vmem>>, vector<3x512xf32>
    tpu.vector_store %arg9[%c0_21, %c0_22], %143 {strides = array<i32>} : memref<3x512xf32, #tpu.memory_space<vmem>>, vector<3x512xf32>,
    return
  }
  func.func @transform_0(%arg0: i32) -> (i32, i32) {
    %c0_i32 = arith.constant 0 : i32
    %c0_i32_0 = arith.constant 0 : i32
    return %c0_i32, %arg0 : i32, i32
  }
  func.func @transform_1(%arg0: i32) -> (i32, i32) {
    %c0_i32 = arith.constant 0 : i32
    %c0_i32_0 = arith.constant 0 : i32
    %c0_i32_1 = arith.constant 0 : i32
    return %c0_i32, %c0_i32_0 : i32, i32
  }
  func.func @transform_2(%arg0: i32) -> (i32, i32) {
    %c0_i32 = arith.constant 0 : i32
    %c0_i32_0 = arith.constant 0 : i32
    %c0_i32_1 = arith.constant 0 : i32
    return %c0_i32, %c0_i32_0 : i32, i32
  }
  func.func @transform_3(%arg0: i32) -> (i32, i32) {
    %c0_i32 = arith.constant 0 : i32
    %c0_i32_0 = arith.constant 0 : i32
    %c0_i32_1 = arith.constant 0 : i32
    return %c0_i32, %c0_i32_0 : i32, i32
  }
  func.func @transform_4(%arg0: i32) -> (i32, i32) {
    %c0_i32 = arith.constant 0 : i32
    %c0_i32_0 = arith.constant 0 : i32
    %c0_i32_1 = arith.constant 0 : i32
    return %c0_i32, %c0_i32_0 : i32, i32
  }
  func.func @transform_5(%arg0: i32) -> (i32, i32) {
    %c0_i32 = arith.constant 0 : i32
    %c0_i32_0 = arith.constant 0 : i32
    %c0_i32_1 = arith.constant 0 : i32
    return %c0_i32, %c0_i32_0 : i32, i32
  }
  func.func @transform_6(%arg0: i32) -> (i32, i32) {
    %c0_i32 = arith.constant 0 : i32
    %c0_i32_0 = arith.constant 0 : i32
    %c0_i32_1 = arith.constant 0 : i32
    return %c0_i32, %c0_i32_0 : i32, i32
  }
  func.func @transform_7(%arg0: i32) -> (i32, i32) {
    %c0_i32 = arith.constant 0 : i32
    %c0_i32_0 = arith.constant 0 : i32
    %c0_i32_1 = arith.constant 0 : i32
    return %c0_i32, %c0_i32_0 : i32, i32
  }
  func.func @transform_8(%arg0: i32) -> (i32, i32) {
    %c0_i32 = arith.constant 0 : i32
    %c0_i32_0 = arith.constant 0 : i32
    return %c0_i32, %arg0 : i32, i32
  }
}

</mosaic_0001>

<llo_original>
// kernel: denoise1_forward.1
$region0: #{denoise1_forward.1}
  #allocation0 [shape = 'u32[]', space=smem, size = 0x4, offset = 0x4, fixed_abs, tag = 'smem constant byte address 0x4 - core index']
  #allocation1 [shape = 'u32[144,128]{1,0:T(1,128)}', space=vmem, size = 0x12000, scoped, tag = 'internal scratch']
  %s0 = inlined_call_operand.vmem [shape: f32[8,512], index: 0, kind: input, shape index: {}]
  %s1 = inlined_call_operand.vmem [shape: f32[8,512], index: 1, kind: input, shape index: {}]
  %s2 = inlined_call_operand.vmem [shape: bf16[48,72], index: 2, kind: input, shape index: {}]
  %s3 = inlined_call_operand.vmem [shape: f32[48,1], index: 3, kind: input, shape index: {}]
  %s4 = inlined_call_operand.vmem [shape: bf16[48,432], index: 4, kind: input, shape index: {}]
  %s5 = inlined_call_operand.vmem [shape: f32[48,1], index: 5, kind: input, shape index: {}]
  %s6 = inlined_call_operand.vmem [shape: bf16[3,48], index: 6, kind: input, shape index: {}]
  %s7 = inlined_call_operand.vmem [shape: f32[3,1], index: 7, kind: input, shape index: {}]
  %s8 = inlined_call_operand.vmem [shape: f32[3,512], index: 8, kind: output, shape index: {}]
  %s9 = sld [smem:[#allocation0]]
  $region42: #{denoise1_forward.1} parent=0
    _
  %s11 = ssub.s32 1, %s9
  %s12 = scalar_select 0, %s11, %s9
  // Predicated region
  $region2: #{denoise1_forward.1} parent=0 // pred_check
    _
  $region3: #{denoise1_forward.1} parent=0 // pred_check_branch
    %14 = sbr.rel (0) target = $region5
  $region4: #{denoise1_forward.1} parent=0 // pred_region
    _
  $region5: #{denoise1_forward.1} parent=0 // pred_fallthru
    _
  // Predicated region
  $region6: #{denoise1_forward.1} parent=0 // pred_check
    _
  $region7: #{denoise1_forward.1} parent=0 // pred_check_branch
    %16 = sbr.rel (0) target = $region9
  $region8: #{denoise1_forward.1} parent=0 // pred_region
    _
  $region9: #{denoise1_forward.1} parent=0 // pred_fallthru
    _
  // Predicated region
  $region10: #{denoise1_forward.1} parent=0 // pred_check
    _
  $region11: #{denoise1_forward.1} parent=0 // pred_check_branch
    %18 = sbr.rel (0) target = $region13
  $region12: #{denoise1_forward.1} parent=0 // pred_region
    _
  $region13: #{denoise1_forward.1} parent=0 // pred_fallthru
    _
  // Predicated region
  $region14: #{denoise1_forward.1} parent=0 // pred_check
    _
  $region15: #{denoise1_forward.1} parent=0 // pred_check_branch
    %20 = sbr.rel (0) target = $region17
  $region16: #{denoise1_forward.1} parent=0 // pred_region
    _
  $region17: #{denoise1_forward.1} parent=0 // pred_fallthru
    _
  // Predicated region
  $region18: #{denoise1_forward.1} parent=0 // pred_check
    _
  $region19: #{denoise1_forward.1} parent=0 // pred_check_branch
    %22 = sbr.rel (0) target = $region21
  $region20: #{denoise1_forward.1} parent=0 // pred_region
    _
  $region21: #{denoise1_forward.1} parent=0 // pred_fallthru
    _
  // Predicated region
  $region22: #{denoise1_forward.1} parent=0 // pred_check
    _
  $region23: #{denoise1_forward.1} parent=0 // pred_check_branch
    %24 = sbr.rel (0) target = $region25
  $region24: #{denoise1_forward.1} parent=0 // pred_region
    _
  $region25: #{denoise1_forward.1} parent=0 // pred_fallthru
    _
  // Predicated region
  $region26: #{denoise1_forward.1} parent=0 // pred_check
    _
  $region27: #{denoise1_forward.1} parent=0 // pred_check_branch
    %26 = sbr.rel (0) target = $region29
  $region28: #{denoise1_forward.1} parent=0 // pred_region
    _
  $region29: #{denoise1_forward.1} parent=0 // pred_fallthru
    _
  // Predicated region
  $region30: #{denoise1_forward.1} parent=0 // pred_check
    _
  $region31: #{denoise1_forward.1} parent=0 // pred_check_branch
    %28 = sbr.rel (0) target = $region33
  $region32: #{denoise1_forward.1} parent=0 // pred_region
    _
  $region33: #{denoise1_forward.1} parent=0 // pred_fallthru
    _
  %v30 = vld [vmem:[%s0] sm:$0xff]
  %v31 = vld [vmem:[%s0 + $0x8] sm:$0xff]
  %v32 = vld [vmem:[%s0 + $0x10] sm:$0xff]
  %v33 = vld [vmem:[%s0 + $0x18] sm:$0xff]
  %v34 = vld [vmem:[%s1] sm:$0xff]
  %v35 = vld [vmem:[%s1 + $0x8] sm:$0xff]
  %v36 = vld [vmem:[%s1 + $0x10] sm:$0xff]
  %v37 = vld [vmem:[%s1 + $0x18] sm:$0xff]
  %39 = vrot.lane.b32.xlu0 %v33, 17
  %v40 = vpop.permute.xlu0 %39
  %45 = vrot.lane.b32.xlu0 %v30, 17
  %v46 = vpop.permute.xlu0 %45
  %47 = vrot.lane.b32.xlu0 %v31, 17
  %v48 = vpop.permute.xlu0 %47
  %49 = vrot.lane.b32.xlu0 %v32, 17
  %v50 = vpop.permute.xlu0 %49
  %vm51 = vcmask 138240
  %v52 = vsel %vm51, %v46, %v48
  %v53 = vsel %vm51, %v48, %v50
  %v54 = vsel %vm51, %v50, %v40
  %v59 = vsel %vm51, %v40, %v46
  %v60 = vlaneseq
  %v61 = vshrl.u32 %v60, 7
  %v62 = vsub.s32 0, %v61
  %v63 = vrot.slane %v34, %v62
  %v64 = vlaneseq
  %v65 = vshrl.u32 %v64, 7
  %v66 = vsub.s32 0, %v65
  %v67 = vrot.slane %v35, %v66
  %v68 = vlaneseq
  %v69 = vshrl.u32 %v68, 7
  %v70 = vsub.s32 0, %v69
  %v71 = vrot.slane %v36, %v70
  %v72 = vlaneseq
  %v73 = vshrl.u32 %v72, 7
  %v74 = vsub.s32 0, %v73
  %v75 = vrot.slane %v37, %v74
  %v76 = vmul.f32 %v59, %v63
  %v77 = vmul.f32 %v52, %v67
  %v78 = vmul.f32 %v53, %v71
  %v79 = vmul.f32 %v54, %v75
  %v80 = vpack.c.bf16 %v76, %v76
  %v81 = vpack.c.bf16 %v77, %v77
  %v82 = vpack.c.bf16 %v78, %v78
  %v83 = vpack.c.bf16 %v79, %v79
  %84 = vrot.lane.b32.xlu0 %v33, 16
  %v85 = vpop.permute.xlu0 %84
  %87 = vrot.lane.b32.xlu0 %v30, 16
  %v88 = vpop.permute.xlu0 %87
  %89 = vrot.lane.b32.xlu0 %v31, 16
  %v90 = vpop.permute.xlu0 %89
  %91 = vrot.lane.b32.xlu0 %v32, 16
  %v92 = vpop.permute.xlu0 %91
  %vm93 = vcmask 130048
  %v94 = vsel %vm93, %v88, %v90
  %v95 = vsel %vm93, %v90, %v92
  %v96 = vsel %vm93, %v92, %v85
  %v101 = vsel %vm93, %v85, %v88
  %v102 = vlaneseq
  %v103 = vshrl.u32 %v102, 7
  %v104 = vsub.s32 1, %v103
  %v105 = vrot.slane %v34, %v104
  %v106 = vlaneseq
  %v107 = vshrl.u32 %v106, 7
  %v108 = vsub.s32 1, %v107
  %v109 = vrot.slane %v35, %v108
  %v110 = vlaneseq
  %v111 = vshrl.u32 %v110, 7
  %v112 = vsub.s32 1, %v111
  %v113 = vrot.slane %v36, %v112
  %v114 = vlaneseq
  %v115 = vshrl.u32 %v114, 7
  %v116 = vsub.s32 1, %v115
  %v117 = vrot.slane %v37, %v116
  %v118 = vmul.f32 %v101, %v105
  %v119 = vmul.f32 %v94, %v109
  %v120 = vmul.f32 %v95, %v113
  %v121 = vmul.f32 %v96, %v117
  %v122 = vpack.c.bf16 %v118, %v118
  %v123 = vpack.c.bf16 %v119, %v119
  %v124 = vpack.c.bf16 %v120, %v120
  %v125 = vpack.c.bf16 %v121, %v121
  %126 = vrot.lane.b32.xlu0 %v33, 15
  %v127 = vpop.permute.xlu0 %126
  %129 = vrot.lane.b32.xlu0 %v30, 15
  %v130 = vpop.permute.xlu0 %129
  %131 = vrot.lane.b32.xlu0 %v31, 15
  %v132 = vpop.permute.xlu0 %131
  %133 = vrot.lane.b32.xlu0 %v32, 15
  %v134 = vpop.permute.xlu0 %133
  %vm135 = vcmask 121856
  %v136 = vsel %vm135, %v130, %v132
  %v137 = vsel %vm135, %v132, %v134
  %v138 = vsel %vm135, %v134, %v127
  %v143 = vsel %vm135, %v127, %v130
  %v144 = vlaneseq
  %v145 = vshrl.u32 %v144, 7
  %v146 = vsub.s32 2, %v145
  %v147 = vrot.slane %v34, %v146
  %v148 = vlaneseq
  %v149 = vshrl.u32 %v148, 7
  %v150 = vsub.s32 2, %v149
  %v151 = vrot.slane %v35, %v150
  %v152 = vlaneseq
  %v153 = vshrl.u32 %v152, 7
  %v154 = vsub.s32 2, %v153
  %v155 = vrot.slane %v36, %v154
  %v156 = vlaneseq
  %v157 = vshrl.u32 %v156, 7
  %v158 = vsub.s32 2, %v157
  %v159 = vrot.slane %v37, %v158
  %v160 = vmul.f32 %v143, %v147
  %v161 = vmul.f32 %v136, %v151
  %v162 = vmul.f32 %v137, %v155
  %v163 = vmul.f32 %v138, %v159
  %v164 = vpack.c.bf16 %v160, %v160
  %v165 = vpack.c.bf16 %v161, %v161
  %v166 = vpack.c.bf16 %v162, %v162
  %v167 = vpack.c.bf16 %v163, %v163
  %168 = vrot.lane.b32.xlu0 %v33, 1
  %v169 = vpop.permute.xlu0 %168
  %171 = vrot.lane.b32.xlu0 %v30, 1
  %v172 = vpop.permute.xlu0 %171
  %173 = vrot.lane.b32.xlu0 %v31, 1
  %v174 = vpop.permute.xlu0 %173
  %175 = vrot.lane.b32.xlu0 %v32, 1
  %v176 = vpop.permute.xlu0 %175
  %vm177 = vcmask 7168
  %v178 = vsel %vm177, %v172, %v174
  %v179 = vsel %vm177, %v174, %v176
  %v180 = vsel %vm177, %v176, %v169
  %v185 = vsel %vm177, %v169, %v172
  %v186 = vlaneseq
  %v187 = vshrl.u32 %v186, 7
  %v188 = vsub.s32 3, %v187
  %v189 = vrot.slane %v34, %v188
  %v190 = vlaneseq
  %v191 = vshrl.u32 %v190, 7
  %v192 = vsub.s32 3, %v191
  %v193 = vrot.slane %v35, %v192
  %v194 = vlaneseq
  %v195 = vshrl.u32 %v194, 7
  %v196 = vsub.s32 3, %v195
  %v197 = vrot.slane %v36, %v196
  %v198 = vlaneseq
  %v199 = vshrl.u32 %v198, 7
  %v200 = vsub.s32 3, %v199
  %v201 = vrot.slane %v37, %v200
  %v202 = vmul.f32 %v185, %v189
  %v203 = vmul.f32 %v178, %v193
  %v204 = vmul.f32 %v179, %v197
  %v205 = vmul.f32 %v180, %v201
  %v206 = vpack.c.bf16 %v202, %v202
  %v207 = vpack.c.bf16 %v203, %v203
  %v208 = vpack.c.bf16 %v204, %v204
  %v209 = vpack.c.bf16 %v205, %v205
  %v210 = vpack.c.bf16 %v30, %v30
  %v211 = vpack.c.bf16 %v31, %v31
  %v212 = vpack.c.bf16 %v32, %v32
  %v213 = vpack.c.bf16 %v33, %v33
  %214 = vrot.lane.b32.xlu0 %v30, 127
  %v215 = vpop.permute.xlu0 %214
  %216 = vrot.lane.b32.xlu0 %v31, 127
  %v217 = vpop.permute.xlu0 %216
  %218 = vrot.lane.b32.xlu0 %v32, 127
  %v219 = vpop.permute.xlu0 %218
  %220 = vrot.lane.b32.xlu0 %v33, 127
  %v221 = vpop.permute.xlu0 %220
  %vm222 = vcmask 1039360
  %v223 = vsel %vm222, %v215, %v217
  %v224 = vsel %vm222, %v217, %v219
  %v225 = vsel %vm222, %v219, %v221
  %v231 = vsel %vm222, %v221, %v215
  %v232 = vlaneseq
  %v233 = vshrl.u32 %v232, 7
  %v234 = vsub.s32 4, %v233
  %v235 = vrot.slane %v34, %v234
  %v236 = vlaneseq
  %v237 = vshrl.u32 %v236, 7
  %v238 = vsub.s32 4, %v237
  %v239 = vrot.slane %v35, %v238
  %v240 = vlaneseq
  %v241 = vshrl.u32 %v240, 7
  %v242 = vsub.s32 4, %v241
  %v243 = vrot.slane %v36, %v242
  %v244 = vlaneseq
  %v245 = vshrl.u32 %v244, 7
  %v246 = vsub.s32 4, %v245
  %v247 = vrot.slane %v37, %v246
  %v248 = vmul.f32 %v223, %v235
  %v249 = vmul.f32 %v224, %v239
  %v250 = vmul.f32 %v225, %v243
  %v251 = vmul.f32 %v231, %v247
  %v252 = vpack.c.bf16 %v248, %v248
  %v253 = vpack.c.bf16 %v249, %v249
  %v254 = vpack.c.bf16 %v250, %v250
  %v255 = vpack.c.bf16 %v251, %v251
  %256 = vrot.lane.b32.xlu0 %v30, 113
  %v257 = vpop.permute.xlu0 %256
  %258 = vrot.lane.b32.xlu0 %v31, 113
  %v259 = vpop.permute.xlu0 %258
  %260 = vrot.lane.b32.xlu0 %v32, 113
  %v261 = vpop.permute.xlu0 %260
  %262 = vrot.lane.b32.xlu0 %v33, 113
  %v263 = vpop.permute.xlu0 %262
  %vm264 = vcmask 924672
  %v265 = vsel %vm264, %v257, %v259
  %v266 = vsel %vm264, %v259, %v261
  %v267 = vsel %vm264, %v261, %v263
  %v273 = vsel %vm264, %v263, %v257
  %v274 = vlaneseq
  %v275 = vshrl.u32 %v274, 7
  %v276 = vsub.s32 5, %v275
  %v277 = vrot.slane %v34, %v276
  %v278 = vlaneseq
  %v279 = vshrl.u32 %v278, 7
  %v280 = vsub.s32 5, %v279
  %v281 = vrot.slane %v35, %v280
  %v282 = vlaneseq
  %v283 = vshrl.u32 %v282, 7
  %v284 = vsub.s32 5, %v283
  %v285 = vrot.slane %v36, %v284
  %v286 = vlaneseq
  %v287 = vshrl.u32 %v286, 7
  %v288 = vsub.s32 5, %v287
  %v289 = vrot.slane %v37, %v288
  %v290 = vmul.f32 %v265, %v277
  %v291 = vmul.f32 %v266, %v281
  %v292 = vmul.f32 %v267, %v285
  %v293 = vmul.f32 %v273, %v289
  %v294 = vpack.c.bf16 %v290, %v290
  %v295 = vpack.c.bf16 %v291, %v291
  %v296 = vpack.c.bf16 %v292, %v292
  %v297 = vpack.c.bf16 %v293, %v293
  %298 = vrot.lane.b32.xlu0 %v30, 112
  %v299 = vpop.permute.xlu0 %298
  %300 = vrot.lane.b32.xlu0 %v31, 112
  %v301 = vpop.permute.xlu0 %300
  %302 = vrot.lane.b32.xlu0 %v32, 112
  %v303 = vpop.permute.xlu0 %302
  %304 = vrot.lane.b32.xlu0 %v33, 112
  %v305 = vpop.permute.xlu0 %304
  %vm306 = vcmask 916480
  %v307 = vsel %vm306, %v299, %v301
  %v308 = vsel %vm306, %v301, %v303
  %v309 = vsel %vm306, %v303, %v305
  %v315 = vsel %vm306, %v305, %v299
  %v316 = vlaneseq
  %v317 = vshrl.u32 %v316, 7
  %v318 = vsub.s32 6, %v317
  %v319 = vrot.slane %v34, %v318
  %v320 = vlaneseq
  %v321 = vshrl.u32 %v320, 7
  %v322 = vsub.s32 6, %v321
  %v323 = vrot.slane %v35, %v322
  %v324 = vlaneseq
  %v325 = vshrl.u32 %v324, 7
  %v326 = vsub.s32 6, %v325
  %v327 = vrot.slane %v36, %v326
  %v328 = vlaneseq
  %v329 = vshrl.u32 %v328, 7
  %v330 = vsub.s32 6, %v329
  %v331 = vrot.slane %v37, %v330
  %v332 = vmul.f32 %v307, %v319
  %v333 = vmul.f32 %v308, %v323
  %v334 = vmul.f32 %v309, %v327
  %v335 = vmul.f32 %v315, %v331
  %v336 = vpack.c.bf16 %v332, %v332
  %v337 = vpack.c.bf16 %v333, %v333
  %v338 = vpack.c.bf16 %v334, %v334
  %v339 = vpack.c.bf16 %v335, %v335
  %340 = vrot.lane.b32.xlu0 %v30, 111
  %v341 = vpop.permute.xlu0 %340
  %342 = vrot.lane.b32.xlu0 %v31, 111
  %v343 = vpop.permute.xlu0 %342
  %344 = vrot.lane.b32.xlu0 %v32, 111
  %v345 = vpop.permute.xlu0 %344
  %346 = vrot.lane.b32.xlu0 %v33, 111
  %v347 = vpop.permute.xlu0 %346
  %vm348 = vcmask 908288
  %v349 = vsel %vm348, %v341, %v343
  %v350 = vsel %vm348, %v343, %v345
  %v351 = vsel %vm348, %v345, %v347
  %v357 = vsel %vm348, %v347, %v341
  %v358 = vlaneseq
  %v359 = vshrl.u32 %v358, 7
  %v360 = vsub.s32 7, %v359
  %v361 = vrot.slane %v34, %v360
  %v362 = vlaneseq
  %v363 = vshrl.u32 %v362, 7
  %v364 = vsub.s32 7, %v363
  %v365 = vrot.slane %v35, %v364
  %v366 = vlaneseq
  %v367 = vshrl.u32 %v366, 7
  %v368 = vsub.s32 7, %v367
  %v369 = vrot.slane %v36, %v368
  %v370 = vlaneseq
  %v371 = vshrl.u32 %v370, 7
  %v372 = vsub.s32 7, %v371
  %v373 = vrot.slane %v37, %v372
  %v374 = vmul.f32 %v349, %v361
  %v375 = vmul.f32 %v350, %v365
  %v376 = vmul.f32 %v351, %v369
  %v377 = vmul.f32 %v357, %v373
  %v378 = vpack.c.bf16 %v374, %v374
  %v379 = vpack.c.bf16 %v375, %v375
  %v380 = vpack.c.bf16 %v376, %v376
  %v381 = vpack.c.bf16 %v377, %v377
  %v386 = vrot.slane %v122, 4
  %v387 = vrot.slane %v123, 4
  %v388 = vrot.slane %v124, 4
  %v389 = vrot.slane %v125, 4
  %v394 = vrot.slane %v206, 4
  %v395 = vrot.slane %v207, 4
  %v396 = vrot.slane %v208, 4
  %v397 = vrot.slane %v209, 4
  %v402 = vrot.slane %v252, 4
  %v403 = vrot.slane %v253, 4
  %v404 = vrot.slane %v254, 4
  %v405 = vrot.slane %v255, 4
  %v410 = vrot.slane %v336, 4
  %v411 = vrot.slane %v337, 4
  %v412 = vrot.slane %v338, 4
  %v413 = vrot.slane %v339, 4
  %vm414 = vcmask 1043456
  %v417 = vsel %vm414, %v80, %v386
  %v421 = vsel %vm414, %v81, %v387
  %v425 = vsel %vm414, %v82, %v388
  %v429 = vsel %vm414, %v83, %v389
  %v433 = vsel %vm414, %v164, %v394
  %v437 = vsel %vm414, %v165, %v395
  %v441 = vsel %vm414, %v166, %v396
  %v445 = vsel %vm414, %v167, %v397
  %v449 = vsel %vm414, %v210, %v402
  %v453 = vsel %vm414, %v211, %v403
  %v457 = vsel %vm414, %v212, %v404
  %v461 = vsel %vm414, %v213, %v405
  %v465 = vsel %vm414, %v294, %v410
  %v469 = vsel %vm414, %v295, %v411
  %v473 = vsel %vm414, %v296, %v412
  %v477 = vsel %vm414, %v297, %v413
  %v479 = vld [vmem:[%s2] sm:$0xf]
  %v480 = vld [vmem:[%s2 + $0x4] sm:$0xf]
  %v481 = vld [vmem:[%s2 + $0x8] sm:$0xf]
  %v482 = vld [vmem:[%s2 + $0xc] sm:$0xf]
  %v483 = vld [vmem:[%s2 + $0x10] sm:$0xf]
  %v484 = vld [vmem:[%s2 + $0x14] sm:$0xf]
  %v485 = vld [vmem:[%s3] sm:$0xff]
  %v486 = vld [vmem:[%s3 + $0x8] sm:$0xff]
  %v487 = vld [vmem:[%s3 + $0x10] sm:$0xff]
  %v488 = vld [vmem:[%s3 + $0x18] sm:$0xff]
  %v489 = vld [vmem:[%s3 + $0x20] sm:$0xff]
  %v490 = vld [vmem:[%s3 + $0x28] sm:$0xff]
  %492 = vset.pattern.permute.xlu0 0
  %493 = vperm.xlu0 %492, %v485
  %v494 = vpop.permute.xlu0 %493
  %497 = vset.pattern.permute.xlu0 0
  %498 = vperm.xlu0 %497, %v486
  %v499 = vpop.permute.xlu0 %498
  %502 = vset.pattern.permute.xlu0 0
  %503 = vperm.xlu0 %502, %v487
  %v504 = vpop.permute.xlu0 %503
  %507 = vset.pattern.permute.xlu0 0
  %508 = vperm.xlu0 %507, %v488
  %v509 = vpop.permute.xlu0 %508
  %512 = vset.pattern.permute.xlu0 0
  %513 = vperm.xlu0 %512, %v489
  %v514 = vpop.permute.xlu0 %513
  %517 = vset.pattern.permute.xlu0 0
  %518 = vperm.xlu0 %517, %v490
  %v519 = vpop.permute.xlu0 %518
  %v527 = vunpack.c.l.b16 %v479
  %v528 = vunpack.c.l.b16 %v480
  %v529 = vunpack.c.l.b16 %v481
  %v530 = vunpack.c.l.b16 %v482
  %v531 = vunpack.c.l.b16 %v483
  %v532 = vunpack.c.l.b16 %v484
  %v533 = vpack.c.b16 %v528, %v527
  %v534 = vpack.c.b16 %v530, %v529
  %v535 = vpack.c.b16 %v532, %v531
  %vm536 = vcmask 588800
  %v538 = vsel %vm536, %v533, 0
  %v541 = vsel %vm536, %v534, 0
  %v544 = vsel %vm536, %v535, 0
  %v547 = vsel %vm414, %v378, 0
  %v550 = vsel %vm414, %v379, 0
  %v553 = vsel %vm414, %v380, 0
  %v556 = vsel %vm414, %v381, 0
  %558 = vmatprep.subr.bf16.mxu0 %v421
  %559 = vmatpush1.bf16.msra.mxu0 %v417
  %560 = vmatprep.subr.bf16.mxu0 %v437
  %561 = vmatpush1.bf16.msra.mxu0 %v433
  %562 = vmatprep.subr.bf16.mxu0 %v453
  %563 = vmatpush1.bf16.msra.mxu0 %v449
  %564 = vmatprep.subr.bf16.mxu0 %v469
  %565 = vmatpush1.bf16.msra.mxu0 %v465
  %566 = vmatprep.subr.bf16.mxu0 %v550
  %567 = vmatpush1.bf16.msra.mxu0 %v547
  %568 = vmatprep.subr.bf16.mxu0 0
  %569 = vmatpush1.bf16.msra.mxu0 0
  %570 = vmatprep.subr.bf16.mxu0 0
  %571 = vmatpush1.bf16.msra.mxu0 0
  %572 = vmatprep.subr.bf16.mxu0 0
  %573 = vmatpush1.bf16.msra.mxu0 0
  %574 = vmatprep.subr.bf16.mxu0 0
  %575 = vmatpush1.bf16.msra.mxu0 0
  %576 = vmatprep.subr.bf16.mxu0 0
  %577 = vmatpush1.bf16.msra.mxu0 0
  %578 = vmatprep.subr.bf16.mxu0 0
  %579 = vmatpush1.bf16.msra.mxu0 0
  %580 = vmatprep.subr.bf16.mxu0 0
  %581 = vmatpush1.bf16.msra.mxu0 0
  %582 = vmatprep.subr.bf16.mxu0 0
  %583 = vmatpush1.bf16.msra.mxu0 0
  %584 = vmatprep.subr.bf16.mxu0 0
  %585 = vmatpush1.bf16.msra.mxu0 0
  %586 = vmatprep.subr.bf16.mxu0 0
  %587 = vmatpush1.bf16.msra.mxu0 0
  %588 = vmatprep.subr.bf16.mxu0 0
  %589 = vmatpush1.bf16.msra.mxu0 0
  %590 = vmatprep.mubr.bf16.mxu0 0
  %591 = vmatmul.mubr.bf16.gmra.mrb[0].mxu0 %v538
  %v592 = vpop.f32.mrb[0].mxu0
  %v593 = vadd.f32 %v494, %v592
  %v594 = vpop.f32.mrb[0].mxu0
  %v595 = vadd.f32 %v494, %v594
  %v596 = vpop.f32.mrb[0].mxu0
  %v597 = vadd.f32 %v499, %v596
  %v598 = vpop.f32.mrb[0].mxu0
  %v599 = vadd.f32 %v499, %v598
  %600 = vmatprep.mubr.bf16.mxu0 0
  %601 = vmatmul.mubr.bf16.gmra.mrb[0].mxu0 %v541
  %v602 = vpop.f32.mrb[0].mxu0
  %v603 = vadd.f32 %v504, %v602
  %v604 = vpop.f32.mrb[0].mxu0
  %v605 = vadd.f32 %v504, %v604
  %v606 = vpop.f32.mrb[0].mxu0
  %v607 = vadd.f32 %v509, %v606
  %v608 = vpop.f32.mrb[0].mxu0
  %v609 = vadd.f32 %v509, %v608
  %610 = vmatprep.mubr.bf16.mxu0 0
  %611 = vmatmul.mubr.bf16.gmra.mrb[0].mxu0 %v544
  %v612 = vpop.f32.mrb[0].mxu0
  %v613 = vadd.f32 %v514, %v612
  %v614 = vpop.f32.mrb[0].mxu0
  %v615 = vadd.f32 %v514, %v614
  %v616 = vpop.f32.mrb[0].mxu0
  %v617 = vadd.f32 %v519, %v616
  %v618 = vpop.f32.mrb[0].mxu0
  %v619 = vadd.f32 %v519, %v618
  %620 = vdwg.mxu0
  %621 = vmatprep.subr.bf16.mxu0 %v429
  %622 = vmatpush1.bf16.msra.mxu0 %v425
  %623 = vmatprep.subr.bf16.mxu0 %v445
  %624 = vmatpush1.bf16.msra.mxu0 %v441
  %625 = vmatprep.subr.bf16.mxu0 %v461
  %626 = vmatpush1.bf16.msra.mxu0 %v457
  %627 = vmatprep.subr.bf16.mxu0 %v477
  %628 = vmatpush1.bf16.msra.mxu0 %v473
  %629 = vmatprep.subr.bf16.mxu0 %v556
  %630 = vmatpush1.bf16.msra.mxu0 %v553
  %631 = vmatprep.subr.bf16.mxu0 0
  %632 = vmatpush1.bf16.msra.mxu0 0
  %633 = vmatprep.subr.bf16.mxu0 0
  %634 = vmatpush1.bf16.msra.mxu0 0
  %635 = vmatprep.subr.bf16.mxu0 0
  %636 = vmatpush1.bf16.msra.mxu0 0
  %637 = vmatprep.subr.bf16.mxu0 0
  %638 = vmatpush1.bf16.msra.mxu0 0
  %639 = vmatprep.subr.bf16.mxu0 0
  %640 = vmatpush1.bf16.msra.mxu0 0
  %641 = vmatprep.subr.bf16.mxu0 0
  %642 = vmatpush1.bf16.msra.mxu0 0
  %643 = vmatprep.subr.bf16.mxu0 0
  %644 = vmatpush1.bf16.msra.mxu0 0
  %645 = vmatprep.subr.bf16.mxu0 0
  %646 = vmatpush1.bf16.msra.mxu0 0
  %647 = vmatprep.subr.bf16.mxu0 0
  %648 = vmatpush1.bf16.msra.mxu0 0
  %649 = vmatprep.subr.bf16.mxu0 0
  %650 = vmatpush1.bf16.msra.mxu0 0
  %651 = vmatprep.subr.bf16.mxu0 0
  %652 = vmatpush1.bf16.msra.mxu0 0
  %653 = vmatprep.mubr.bf16.mxu0 0
  %654 = vmatmul.mubr.bf16.gmra.mrb[0].mxu0 %v538
  %v655 = vpop.f32.mrb[0].mxu0
  %v656 = vadd.f32 %v494, %v655
  %v657 = vpop.f32.mrb[0].mxu0
  %v658 = vadd.f32 %v494, %v657
  %v659 = vpop.f32.mrb[0].mxu0
  %v660 = vadd.f32 %v499, %v659
  %v661 = vpop.f32.mrb[0].mxu0
  %v662 = vadd.f32 %v499, %v661
  %663 = vmatprep.mubr.bf16.mxu0 0
  %664 = vmatmul.mubr.bf16.gmra.mrb[0].mxu0 %v541
  %v665 = vpop.f32.mrb[0].mxu0
  %v666 = vadd.f32 %v504, %v665
  %v667 = vpop.f32.mrb[0].mxu0
  %v668 = vadd.f32 %v504, %v667
  %v669 = vpop.f32.mrb[0].mxu0
  %v670 = vadd.f32 %v509, %v669
  %v671 = vpop.f32.mrb[0].mxu0
  %v672 = vadd.f32 %v509, %v671
  %673 = vmatprep.mubr.bf16.mxu0 0
  %674 = vmatmul.mubr.bf16.gmra.mrb[0].mxu0 %v544
  %v675 = vpop.f32.mrb[0].mxu0
  %v676 = vadd.f32 %v514, %v675
  %v677 = vpop.f32.mrb[0].mxu0
  %v678 = vadd.f32 %v514, %v677
  %v679 = vpop.f32.mrb[0].mxu0
  %v680 = vadd.f32 %v519, %v679
  %v681 = vpop.f32.mrb[0].mxu0
  %v682 = vadd.f32 %v519, %v681
  %683 = vdwg.mxu0
  %vm684 = vcmp.ge.f32.partialorder %v593, 0.0
  %vm685 = vcmp.ge.f32.partialorder %v595, 0.0
  %vm686 = vcmp.ge.f32.partialorder %v656, 0.0
  %vm687 = vcmp.ge.f32.partialorder %v658, 0.0
  %vm688 = vcmp.ge.f32.partialorder %v597, 0.0
  %vm689 = vcmp.ge.f32.partialorder %v599, 0.0
  %vm690 = vcmp.ge.f32.partialorder %v660, 0.0
  %vm691 = vcmp.ge.f32.partialorder %v662, 0.0
  %vm692 = vcmp.ge.f32.partialorder %v603, 0.0
  %vm693 = vcmp.ge.f32.partialorder %v605, 0.0
  %vm694 = vcmp.ge.f32.partialorder %v666, 0.0
  %vm695 = vcmp.ge.f32.partialorder %v668, 0.0
  %vm696 = vcmp.ge.f32.partialorder %v607, 0.0
  %vm697 = vcmp.ge.f32.partialorder %v609, 0.0
  %vm698 = vcmp.ge.f32.partialorder %v670, 0.0
  %vm699 = vcmp.ge.f32.partialorder %v672, 0.0
  %vm700 = vcmp.ge.f32.partialorder %v613, 0.0
  %vm701 = vcmp.ge.f32.partialorder %v615, 0.0
  %vm702 = vcmp.ge.f32.partialorder %v676, 0.0
  %vm703 = vcmp.ge.f32.partialorder %v678, 0.0
  %vm704 = vcmp.ge.f32.partialorder %v617, 0.0
  %vm705 = vcmp.ge.f32.partialorder %v619, 0.0
  %vm706 = vcmp.ge.f32.partialorder %v680, 0.0
  %vm707 = vcmp.ge.f32.partialorder %v682, 0.0
  %v708 = vmul.f32 %v593, 0.2
  %v709 = vmul.f32 %v595, 0.2
  %v710 = vmul.f32 %v656, 0.2
  %v711 = vmul.f32 %v658, 0.2
  %v712 = vmul.f32 %v597, 0.2
  %v713 = vmul.f32 %v599, 0.2
  %v714 = vmul.f32 %v660, 0.2
  %v715 = vmul.f32 %v662, 0.2
  %v716 = vmul.f32 %v603, 0.2
  %v717 = vmul.f32 %v605, 0.2
  %v718 = vmul.f32 %v666, 0.2
  %v719 = vmul.f32 %v668, 0.2
  %v720 = vmul.f32 %v607, 0.2
  %v721 = vmul.f32 %v609, 0.2
  %v722 = vmul.f32 %v670, 0.2
  %v723 = vmul.f32 %v672, 0.2
  %v724 = vmul.f32 %v613, 0.2
  %v725 = vmul.f32 %v615, 0.2
  %v726 = vmul.f32 %v676, 0.2
  %v727 = vmul.f32 %v678, 0.2
  %v728 = vmul.f32 %v617, 0.2
  %v729 = vmul.f32 %v619, 0.2
  %v730 = vmul.f32 %v680, 0.2
  %v731 = vmul.f32 %v682, 0.2
  %v732 = vsel %vm684, %v593, %v708
  %v733 = vsel %vm685, %v595, %v709
  %v734 = vsel %vm686, %v656, %v710
  %v735 = vsel %vm687, %v658, %v711
  %v736 = vsel %vm688, %v597, %v712
  %v737 = vsel %vm689, %v599, %v713
  %v738 = vsel %vm690, %v660, %v714
  %v739 = vsel %vm691, %v662, %v715
  %v740 = vsel %vm692, %v603, %v716
  %v741 = vsel %vm693, %v605, %v717
  %v742 = vsel %vm694, %v666, %v718
  %v743 = vsel %vm695, %v668, %v719
  %v744 = vsel %vm696, %v607, %v720
  %v745 = vsel %vm697, %v609, %v721
  %v746 = vsel %vm698, %v670, %v722
  %v747 = vsel %vm699, %v672, %v723
  %v748 = vsel %vm700, %v613, %v724
  %v749 = vsel %vm701, %v615, %v725
  %v750 = vsel %vm702, %v676, %v726
  %v751 = vsel %vm703, %v678, %v727
  %v752 = vsel %vm704, %v617, %v728
  %v753 = vsel %vm705, %v619, %v729
  %v754 = vsel %vm706, %v680, %v730
  %v755 = vsel %vm707, %v682, %v731
  %762 = vrot.lane.b32.xlu0 %v735, 17
  %v763 = vpop.permute.xlu0 %762
  %764 = vrot.lane.b32.xlu0 %v739, 17
  %v765 = vpop.permute.xlu0 %764
  %766 = vrot.lane.b32.xlu0 %v743, 17
  %v767 = vpop.permute.xlu0 %766
  %768 = vrot.lane.b32.xlu0 %v747, 17
  %v769 = vpop.permute.xlu0 %768
  %770 = vrot.lane.b32.xlu0 %v751, 17
  %v771 = vpop.permute.xlu0 %770
  %772 = vrot.lane.b32.xlu0 %v755, 17
  %v773 = vpop.permute.xlu0 %772
  %798 = vrot.lane.b32.xlu0 %v732, 17
  %v799 = vpop.permute.xlu0 %798
  %800 = vrot.lane.b32.xlu0 %v733, 17
  %v801 = vpop.permute.xlu0 %800
  %802 = vrot.lane.b32.xlu0 %v734, 17
  %v803 = vpop.permute.xlu0 %802
  %804 = vrot.lane.b32.xlu0 %v736, 17
  %v805 = vpop.permute.xlu0 %804
  %806 = vrot.lane.b32.xlu0 %v737, 17
  %v807 = vpop.permute.xlu0 %806
  %808 = vrot.lane.b32.xlu0 %v738, 17
  %v809 = vpop.permute.xlu0 %808
  %810 = vrot.lane.b32.xlu0 %v740, 17
  %v811 = vpop.permute.xlu0 %810
  %812 = vrot.lane.b32.xlu0 %v741, 17
  %v813 = vpop.permute.xlu0 %812
  %814 = vrot.lane.b32.xlu0 %v742, 17
  %v815 = vpop.permute.xlu0 %814
  %816 = vrot.lane.b32.xlu0 %v744, 17
  %v817 = vpop.permute.xlu0 %816
  %818 = vrot.lane.b32.xlu0 %v745, 17
  %v819 = vpop.permute.xlu0 %818
  %820 = vrot.lane.b32.xlu0 %v746, 17
  %v821 = vpop.permute.xlu0 %820
  %822 = vrot.lane.b32.xlu0 %v748, 17
  %v823 = vpop.permute.xlu0 %822
  %824 = vrot.lane.b32.xlu0 %v749, 17
  %v825 = vpop.permute.xlu0 %824
  %826 = vrot.lane.b32.xlu0 %v750, 17
  %v827 = vpop.permute.xlu0 %826
  %828 = vrot.lane.b32.xlu0 %v752, 17
  %v829 = vpop.permute.xlu0 %828
  %830 = vrot.lane.b32.xlu0 %v753, 17
  %v831 = vpop.permute.xlu0 %830
  %832 = vrot.lane.b32.xlu0 %v754, 17
  %v833 = vpop.permute.xlu0 %832
  %v834 = vsel %vm51, %v799, %v801
  %v835 = vsel %vm51, %v801, %v803
  %v836 = vsel %vm51, %v803, %v763
  %v837 = vsel %vm51, %v805, %v807
  %v838 = vsel %vm51, %v807, %v809
  %v839 = vsel %vm51, %v809, %v765
  %v840 = vsel %vm51, %v811, %v813
  %v841 = vsel %vm51, %v813, %v815
  %v842 = vsel %vm51, %v815, %v767
  %v843 = vsel %vm51, %v817, %v819
  %v844 = vsel %vm51, %v819, %v821
  %v845 = vsel %vm51, %v821, %v769
  %v846 = vsel %vm51, %v823, %v825
  %v847 = vsel %vm51, %v825, %v827
  %v848 = vsel %vm51, %v827, %v771
  %v849 = vsel %vm51, %v829, %v831
  %v850 = vsel %vm51, %v831, %v833
  %v851 = vsel %vm51, %v833, %v773
  %v876 = vsel %vm51, %v763, %v799
  %v877 = vsel %vm51, %v765, %v805
  %v878 = vsel %vm51, %v767, %v811
  %v879 = vsel %vm51, %v769, %v817
  %v880 = vsel %vm51, %v771, %v823
  %v881 = vsel %vm51, %v773, %v829
  %v882 = vmul.f32 %v876, %v63
  %v883 = vmul.f32 %v834, %v67
  %v884 = vmul.f32 %v835, %v71
  %v885 = vmul.f32 %v836, %v75
  %v886 = vmul.f32 %v877, %v63
  %v887 = vmul.f32 %v837, %v67
  %v888 = vmul.f32 %v838, %v71
  %v889 = vmul.f32 %v839, %v75
  %v890 = vmul.f32 %v878, %v63
  %v891 = vmul.f32 %v840, %v67
  %v892 = vmul.f32 %v841, %v71
  %v893 = vmul.f32 %v842, %v75
  %v894 = vmul.f32 %v879, %v63
  %v895 = vmul.f32 %v843, %v67
  %v896 = vmul.f32 %v844, %v71
  %v897 = vmul.f32 %v845, %v75
  %v898 = vmul.f32 %v880, %v63
  %v899 = vmul.f32 %v846, %v67
  %v900 = vmul.f32 %v847, %v71
  %v901 = vmul.f32 %v848, %v75
  %v902 = vmul.f32 %v881, %v63
  %v903 = vmul.f32 %v849, %v67
  %v904 = vmul.f32 %v850, %v71
  %v905 = vmul.f32 %v851, %v75
  %v906 = vpack.c.bf16 %v886, %v882
  %v907 = vpack.c.bf16 %v887, %v883
  %v908 = vpack.c.bf16 %v888, %v884
  %v909 = vpack.c.bf16 %v889, %v885
  %v910 = vpack.c.bf16 %v894, %v890
  %v911 = vpack.c.bf16 %v895, %v891
  %v912 = vpack.c.bf16 %v896, %v892
  %v913 = vpack.c.bf16 %v897, %v893
  %v914 = vpack.c.bf16 %v902, %v898
  %v915 = vpack.c.bf16 %v903, %v899
  %v916 = vpack.c.bf16 %v904, %v900
  %v917 = vpack.c.bf16 %v905, %v901
  %918 = vrot.lane.b32.xlu0 %v735, 16
  %v919 = vpop.permute.xlu0 %918
  %920 = vrot.lane.b32.xlu0 %v739, 16
  %v921 = vpop.permute.xlu0 %920
  %922 = vrot.lane.b32.xlu0 %v743, 16
  %v923 = vpop.permute.xlu0 %922
  %924 = vrot.lane.b32.xlu0 %v747, 16
  %v925 = vpop.permute.xlu0 %924
  %926 = vrot.lane.b32.xlu0 %v751, 16
  %v927 = vpop.permute.xlu0 %926
  %928 = vrot.lane.b32.xlu0 %v755, 16
  %v929 = vpop.permute.xlu0 %928
  %936 = vrot.lane.b32.xlu0 %v732, 16
  %v937 = vpop.permute.xlu0 %936
  %938 = vrot.lane.b32.xlu0 %v733, 16
  %v939 = vpop.permute.xlu0 %938
  %940 = vrot.lane.b32.xlu0 %v734, 16
  %v941 = vpop.permute.xlu0 %940
  %942 = vrot.lane.b32.xlu0 %v736, 16
  %v943 = vpop.permute.xlu0 %942
  %944 = vrot.lane.b32.xlu0 %v737, 16
  %v945 = vpop.permute.xlu0 %944
  %946 = vrot.lane.b32.xlu0 %v738, 16
  %v947 = vpop.permute.xlu0 %946
  %948 = vrot.lane.b32.xlu0 %v740, 16
  %v949 = vpop.permute.xlu0 %948
  %950 = vrot.lane.b32.xlu0 %v741, 16
  %v951 = vpop.permute.xlu0 %950
  %952 = vrot.lane.b32.xlu0 %v742, 16
  %v953 = vpop.permute.xlu0 %952
  %954 = vrot.lane.b32.xlu0 %v744, 16
  %v955 = vpop.permute.xlu0 %954
  %956 = vrot.lane.b32.xlu0 %v745, 16
  %v957 = vpop.permute.xlu0 %956
  %958 = vrot.lane.b32.xlu0 %v746, 16
  %v959 = vpop.permute.xlu0 %958
  %960 = vrot.lane.b32.xlu0 %v748, 16
  %v961 = vpop.permute.xlu0 %960
  %962 = vrot.lane.b32.xlu0 %v749, 16
  %v963 = vpop.permute.xlu0 %962
  %964 = vrot.lane.b32.xlu0 %v750, 16
  %v965 = vpop.permute.xlu0 %964
  %966 = vrot.lane.b32.xlu0 %v752, 16
  %v967 = vpop.permute.xlu0 %966
  %968 = vrot.lane.b32.xlu0 %v753, 16
  %v969 = vpop.permute.xlu0 %968
  %970 = vrot.lane.b32.xlu0 %v754, 16
  %v971 = vpop.permute.xlu0 %970
  %v972 = vsel %vm93, %v937, %v939
  %v973 = vsel %vm93, %v939, %v941
  %v974 = vsel %vm93, %v941, %v919
  %v975 = vsel %vm93, %v943, %v945
  %v976 = vsel %vm93, %v945, %v947
  %v977 = vsel %vm93, %v947, %v921
  %v978 = vsel %vm93, %v949, %v951
  %v979 = vsel %vm93, %v951, %v953
  %v980 = vsel %vm93, %v953, %v923
  %v981 = vsel %vm93, %v955, %v957
  %v982 = vsel %vm93, %v957, %v959
  %v983 = vsel %vm93, %v959, %v925
  %v984 = vsel %vm93, %v961, %v963
  %v985 = vsel %vm93, %v963, %v965
  %v986 = vsel %vm93, %v965, %v927
  %v987 = vsel %vm93, %v967, %v969
  %v988 = vsel %vm93, %v969, %v971
  %v989 = vsel %vm93, %v971, %v929
  %v1014 = vsel %vm93, %v919, %v937
  %v1015 = vsel %vm93, %v921, %v943
  %v1016 = vsel %vm93, %v923, %v949
  %v1017 = vsel %vm93, %v925, %v955
  %v1018 = vsel %vm93, %v927, %v961
  %v1019 = vsel %vm93, %v929, %v967
  %v1020 = vmul.f32 %v1014, %v105
  %v1021 = vmul.f32 %v972, %v109
  %v1022 = vmul.f32 %v973, %v113
  %v1023 = vmul.f32 %v974, %v117
  %v1024 = vmul.f32 %v1015, %v105
  %v1025 = vmul.f32 %v975, %v109
  %v1026 = vmul.f32 %v976, %v113
  %v1027 = vmul.f32 %v977, %v117
  %v1028 = vmul.f32 %v1016, %v105
  %v1029 = vmul.f32 %v978, %v109
  %v1030 = vmul.f32 %v979, %v113
  %v1031 = vmul.f32 %v980, %v117
  %v1032 = vmul.f32 %v1017, %v105
  %v1033 = vmul.f32 %v981, %v109
  %v1034 = vmul.f32 %v982, %v113
  %v1035 = vmul.f32 %v983, %v117
  %v1036 = vmul.f32 %v1018, %v105
  %v1037 = vmul.f32 %v984, %v109
  %v1038 = vmul.f32 %v985, %v113
  %v1039 = vmul.f32 %v986, %v117
  %v1040 = vmul.f32 %v1019, %v105
  %v1041 = vmul.f32 %v987, %v109
  %v1042 = vmul.f32 %v988, %v113
  %v1043 = vmul.f32 %v989, %v117
  %v1044 = vpack.c.bf16 %v1024, %v1020
  %v1045 = vpack.c.bf16 %v1025, %v1021
  %v1046 = vpack.c.bf16 %v1026, %v1022
  %v1047 = vpack.c.bf16 %v1027, %v1023
  %v1048 = vpack.c.bf16 %v1032, %v1028
  %v1049 = vpack.c.bf16 %v1033, %v1029
  %v1050 = vpack.c.bf16 %v1034, %v1030
  %v1051 = vpack.c.bf16 %v1035, %v1031
  %v1052 = vpack.c.bf16 %v1040, %v1036
  %v1053 = vpack.c.bf16 %v1041, %v1037
  %v1054 = vpack.c.bf16 %v1042, %v1038
  %v1055 = vpack.c.bf16 %v1043, %v1039
  %1056 = vrot.lane.b32.xlu0 %v735, 15
  %v1057 = vpop.permute.xlu0 %1056
  %1058 = vrot.lane.b32.xlu0 %v739, 15
  %v1059 = vpop.permute.xlu0 %1058
  %1060 = vrot.lane.b32.xlu0 %v743, 15
  %v1061 = vpop.permute.xlu0 %1060
  %1062 = vrot.lane.b32.xlu0 %v747, 15
  %v1063 = vpop.permute.xlu0 %1062
  %1064 = vrot.lane.b32.xlu0 %v751, 15
  %v1065 = vpop.permute.xlu0 %1064
  %1066 = vrot.lane.b32.xlu0 %v755, 15
  %v1067 = vpop.permute.xlu0 %1066
  %1074 = vrot.lane.b32.xlu0 %v732, 15
  %v1075 = vpop.permute.xlu0 %1074
  %1076 = vrot.lane.b32.xlu0 %v733, 15
  %v1077 = vpop.permute.xlu0 %1076
  %1078 = vrot.lane.b32.xlu0 %v734, 15
  %v1079 = vpop.permute.xlu0 %1078
  %1080 = vrot.lane.b32.xlu0 %v736, 15
  %v1081 = vpop.permute.xlu0 %1080
  %1082 = vrot.lane.b32.xlu0 %v737, 15
  %v1083 = vpop.permute.xlu0 %1082
  %1084 = vrot.lane.b32.xlu0 %v738, 15
  %v1085 = vpop.permute.xlu0 %1084
  %1086 = vrot.lane.b32.xlu0 %v740, 15
  %v1087 = vpop.permute.xlu0 %1086
  %1088 = vrot.lane.b32.xlu0 %v741, 15
  %v1089 = vpop.permute.xlu0 %1088
  %1090 = vrot.lane.b32.xlu0 %v742, 15
  %v1091 = vpop.permute.xlu0 %1090
  %1092 = vrot.lane.b32.xlu0 %v744, 15
  %v1093 = vpop.permute.xlu0 %1092
  %1094 = vrot.lane.b32.xlu0 %v745, 15
  %v1095 = vpop.permute.xlu0 %1094
  %1096 = vrot.lane.b32.xlu0 %v746, 15
  %v1097 = vpop.permute.xlu0 %1096
  %1098 = vrot.lane.b32.xlu0 %v748, 15
  %v1099 = vpop.permute.xlu0 %1098
  %1100 = vrot.lane.b32.xlu0 %v749, 15
  %v1101 = vpop.permute.xlu0 %1100
  %1102 = vrot.lane.b32.xlu0 %v750, 15
  %v1103 = vpop.permute.xlu0 %1102
  %1104 = vrot.lane.b32.xlu0 %v752, 15
  %v1105 = vpop.permute.xlu0 %1104
  %1106 = vrot.lane.b32.xlu0 %v753, 15
  %v1107 = vpop.permute.xlu0 %1106
  %1108 = vrot.lane.b32.xlu0 %v754, 15
  %v1109 = vpop.permute.xlu0 %1108
  %v1110 = vsel %vm135, %v1075, %v1077
  %v1111 = vsel %vm135, %v1077, %v1079
  %v1112 = vsel %vm135, %v1079, %v1057
  %v1113 = vsel %vm135, %v1081, %v1083
  %v1114 = vsel %vm135, %v1083, %v1085
  %v1115 = vsel %vm135, %v1085, %v1059
  %v1116 = vsel %vm135, %v1087, %v1089
  %v1117 = vsel %vm135, %v1089, %v1091
  %v1118 = vsel %vm135, %v1091, %v1061
  %v1119 = vsel %vm135, %v1093, %v1095
  %v1120 = vsel %vm135, %v1095, %v1097
  %v1121 = vsel %vm135, %v1097, %v1063
  %v1122 = vsel %vm135, %v1099, %v1101
  %v1123 = vsel %vm135, %v1101, %v1103
  %v1124 = vsel %vm135, %v1103, %v1065
  %v1125 = vsel %vm135, %v1105, %v1107
  %v1126 = vsel %vm135, %v1107, %v1109
  %v1127 = vsel %vm135, %v1109, %v1067
  %v1152 = vsel %vm135, %v1057, %v1075
  %v1153 = vsel %vm135, %v1059, %v1081
  %v1154 = vsel %vm135, %v1061, %v1087
  %v1155 = vsel %vm135, %v1063, %v1093
  %v1156 = vsel %vm135, %v1065, %v1099
  %v1157 = vsel %vm135, %v1067, %v1105
  %v1158 = vmul.f32 %v1152, %v147
  %v1159 = vmul.f32 %v1110, %v151
  %v1160 = vmul.f32 %v1111, %v155
  %v1161 = vmul.f32 %v1112, %v159
  %v1162 = vmul.f32 %v1153, %v147
  %v1163 = vmul.f32 %v1113, %v151
  %v1164 = vmul.f32 %v1114, %v155
  %v1165 = vmul.f32 %v1115, %v159
  %v1166 = vmul.f32 %v1154, %v147
  %v1167 = vmul.f32 %v1116, %v151
  %v1168 = vmul.f32 %v1117, %v155
  %v1169 = vmul.f32 %v1118, %v159
  %v1170 = vmul.f32 %v1155, %v147
  %v1171 = vmul.f32 %v1119, %v151
  %v1172 = vmul.f32 %v1120, %v155
  %v1173 = vmul.f32 %v1121, %v159
  %v1174 = vmul.f32 %v1156, %v147
  %v1175 = vmul.f32 %v1122, %v151
  %v1176 = vmul.f32 %v1123, %v155
  %v1177 = vmul.f32 %v1124, %v159
  %v1178 = vmul.f32 %v1157, %v147
  %v1179 = vmul.f32 %v1125, %v151
  %v1180 = vmul.f32 %v1126, %v155
  %v1181 = vmul.f32 %v1127, %v159
  %v1182 = vpack.c.bf16 %v1162, %v1158
  %v1183 = vpack.c.bf16 %v1163, %v1159
  %v1184 = vpack.c.bf16 %v1164, %v1160
  %v1185 = vpack.c.bf16 %v1165, %v1161
  %v1186 = vpack.c.bf16 %v1170, %v1166
  %v1187 = vpack.c.bf16 %v1171, %v1167
  %v1188 = vpack.c.bf16 %v1172, %v1168
  %v1189 = vpack.c.bf16 %v1173, %v1169
  %v1190 = vpack.c.bf16 %v1178, %v1174
  %v1191 = vpack.c.bf16 %v1179, %v1175
  %v1192 = vpack.c.bf16 %v1180, %v1176
  %v1193 = vpack.c.bf16 %v1181, %v1177
  %1194 = vrot.lane.b32.xlu0 %v735, 1
  %v1195 = vpop.permute.xlu0 %1194
  %1196 = vrot.lane.b32.xlu0 %v739, 1
  %v1197 = vpop.permute.xlu0 %1196
  %1198 = vrot.lane.b32.xlu0 %v743, 1
  %v1199 = vpop.permute.xlu0 %1198
  %1200 = vrot.lane.b32.xlu0 %v747, 1
  %v1201 = vpop.permute.xlu0 %1200
  %1202 = vrot.lane.b32.xlu0 %v751, 1
  %v1203 = vpop.permute.xlu0 %1202
  %1204 = vrot.lane.b32.xlu0 %v755, 1
  %v1205 = vpop.permute.xlu0 %1204
  %1212 = vrot.lane.b32.xlu0 %v732, 1
  %v1213 = vpop.permute.xlu0 %1212
  %1214 = vrot.lane.b32.xlu0 %v733, 1
  %v1215 = vpop.permute.xlu0 %1214
  %1216 = vrot.lane.b32.xlu0 %v734, 1
  %v1217 = vpop.permute.xlu0 %1216
  %1218 = vrot.lane.b32.xlu0 %v736, 1
  %v1219 = vpop.permute.xlu0 %1218
  %1220 = vrot.lane.b32.xlu0 %v737, 1
  %v1221 = vpop.permute.xlu0 %1220
  %1222 = vrot.lane.b32.xlu0 %v738, 1
  %v1223 = vpop.permute.xlu0 %1222
  %1224 = vrot.lane.b32.xlu0 %v740, 1
  %v1225 = vpop.permute.xlu0 %1224
  %1226 = vrot.lane.b32.xlu0 %v741, 1
  %v1227 = vpop.permute.xlu0 %1226
  %1228 = vrot.lane.b32.xlu0 %v742, 1
  %v1229 = vpop.permute.xlu0 %1228
  %1230 = vrot.lane.b32.xlu0 %v744, 1
  %v1231 = vpop.permute.xlu0 %1230
  %1232 = vrot.lane.b32.xlu0 %v745, 1
  %v1233 = vpop.permute.xlu0 %1232
  %1234 = vrot.lane.b32.xlu0 %v746, 1
  %v1235 = vpop.permute.xlu0 %1234
  %1236 = vrot.lane.b32.xlu0 %v748, 1
  %v1237 = vpop.permute.xlu0 %1236
  %1238 = vrot.lane.b32.xlu0 %v749, 1
  %v1239 = vpop.permute.xlu0 %1238
  %1240 = vrot.lane.b32.xlu0 %v750, 1
  %v1241 = vpop.permute.xlu0 %1240
  %1242 = vrot.lane.b32.xlu0 %v752, 1
  %v1243 = vpop.permute.xlu0 %1242
  %1244 = vrot.lane.b32.xlu0 %v753, 1
  %v1245 = vpop.permute.xlu0 %1244
  %1246 = vrot.lane.b32.xlu0 %v754, 1
  %v1247 = vpop.permute.xlu0 %1246
  %v1248 = vsel %vm177, %v1213, %v1215
  %v1249 = vsel %vm177, %v1215, %v1217
  %v1250 = vsel %vm177, %v1217, %v1195
  %v1251 = vsel %vm177, %v1219, %v1221
  %v1252 = vsel %vm177, %v1221, %v1223
  %v1253 = vsel %vm177, %v1223, %v1197
  %v1254 = vsel %vm177, %v1225, %v1227
  %v1255 = vsel %vm177, %v1227, %v1229
  %v1256 = vsel %vm177, %v1229, %v1199
  %v1257 = vsel %vm177, %v1231, %v1233
  %v1258 = vsel %vm177, %v1233, %v1235
  %v1259 = vsel %vm177, %v1235, %v1201
  %v1260 = vsel %vm177, %v1237, %v1239
  %v1261 = vsel %vm177, %v1239, %v1241
  %v1262 = vsel %vm177, %v1241, %v1203
  %v1263 = vsel %vm177, %v1243, %v1245
  %v1264 = vsel %vm177, %v1245, %v1247
  %v1265 = vsel %vm177, %v1247, %v1205
  %v1290 = vsel %vm177, %v1195, %v1213
  %v1291 = vsel %vm177, %v1197, %v1219
  %v1292 = vsel %vm177, %v1199, %v1225
  %v1293 = vsel %vm177, %v1201, %v1231
  %v1294 = vsel %vm177, %v1203, %v1237
  %v1295 = vsel %vm177, %v1205, %v1243
  %v1296 = vmul.f32 %v1290, %v189
  %v1297 = vmul.f32 %v1248, %v193
  %v1298 = vmul.f32 %v1249, %v197
  %v1299 = vmul.f32 %v1250, %v201
  %v1300 = vmul.f32 %v1291, %v189
  %v1301 = vmul.f32 %v1251, %v193
  %v1302 = vmul.f32 %v1252, %v197
  %v1303 = vmul.f32 %v1253, %v201
  %v1304 = vmul.f32 %v1292, %v189
  %v1305 = vmul.f32 %v1254, %v193
  %v1306 = vmul.f32 %v1255, %v197
  %v1307 = vmul.f32 %v1256, %v201
  %v1308 = vmul.f32 %v1293, %v189
  %v1309 = vmul.f32 %v1257, %v193
  %v1310 = vmul.f32 %v1258, %v197
  %v1311 = vmul.f32 %v1259, %v201
  %v1312 = vmul.f32 %v1294, %v189
  %v1313 = vmul.f32 %v1260, %v193
  %v1314 = vmul.f32 %v1261, %v197
  %v1315 = vmul.f32 %v1262, %v201
  %v1316 = vmul.f32 %v1295, %v189
  %v1317 = vmul.f32 %v1263, %v193
  %v1318 = vmul.f32 %v1264, %v197
  %v1319 = vmul.f32 %v1265, %v201
  %v1320 = vpack.c.bf16 %v1300, %v1296
  %v1321 = vpack.c.bf16 %v1301, %v1297
  %v1322 = vpack.c.bf16 %v1302, %v1298
  %v1323 = vpack.c.bf16 %v1303, %v1299
  %v1324 = vpack.c.bf16 %v1308, %v1304
  %v1325 = vpack.c.bf16 %v1309, %v1305
  %v1326 = vpack.c.bf16 %v1310, %v1306
  %v1327 = vpack.c.bf16 %v1311, %v1307
  %v1328 = vpack.c.bf16 %v1316, %v1312
  %v1329 = vpack.c.bf16 %v1317, %v1313
  %v1330 = vpack.c.bf16 %v1318, %v1314
  %v1331 = vpack.c.bf16 %v1319, %v1315
  %v1332 = vpack.c.bf16 %v736, %v732
  %v1333 = vpack.c.bf16 %v737, %v733
  %v1334 = vpack.c.bf16 %v738, %v734
  %v1335 = vpack.c.bf16 %v739, %v735
  %v1336 = vpack.c.bf16 %v744, %v740
  %v1337 = vpack.c.bf16 %v745, %v741
  %v1338 = vpack.c.bf16 %v746, %v742
  %v1339 = vpack.c.bf16 %v747, %v743
  %v1340 = vpack.c.bf16 %v752, %v748
  %v1341 = vpack.c.bf16 %v753, %v749
  %v1342 = vpack.c.bf16 %v754, %v750
  %v1343 = vpack.c.bf16 %v755, %v751
  %1344 = vrot.lane.b32.xlu0 %v732, 127
  %v1345 = vpop.permute.xlu0 %1344
  %1346 = vrot.lane.b32.xlu0 %v733, 127
  %v1347 = vpop.permute.xlu0 %1346
  %1348 = vrot.lane.b32.xlu0 %v734, 127
  %v1349 = vpop.permute.xlu0 %1348
  %1350 = vrot.lane.b32.xlu0 %v735, 127
  %v1351 = vpop.permute.xlu0 %1350
  %1352 = vrot.lane.b32.xlu0 %v736, 127
  %v1353 = vpop.permute.xlu0 %1352
  %1354 = vrot.lane.b32.xlu0 %v737, 127
  %v1355 = vpop.permute.xlu0 %1354
  %1356 = vrot.lane.b32.xlu0 %v738, 127
  %v1357 = vpop.permute.xlu0 %1356
  %1358 = vrot.lane.b32.xlu0 %v739, 127
  %v1359 = vpop.permute.xlu0 %1358
  %1360 = vrot.lane.b32.xlu0 %v740, 127
  %v1361 = vpop.permute.xlu0 %1360
  %1362 = vrot.lane.b32.xlu0 %v741, 127
  %v1363 = vpop.permute.xlu0 %1362
  %1364 = vrot.lane.b32.xlu0 %v742, 127
  %v1365 = vpop.permute.xlu0 %1364
  %1366 = vrot.lane.b32.xlu0 %v743, 127
  %v1367 = vpop.permute.xlu0 %1366
  %1368 = vrot.lane.b32.xlu0 %v744, 127
  %v1369 = vpop.permute.xlu0 %1368
  %1370 = vrot.lane.b32.xlu0 %v745, 127
  %v1371 = vpop.permute.xlu0 %1370
  %1372 = vrot.lane.b32.xlu0 %v746, 127
  %v1373 = vpop.permute.xlu0 %1372
  %1374 = vrot.lane.b32.xlu0 %v747, 127
  %v1375 = vpop.permute.xlu0 %1374
  %1376 = vrot.lane.b32.xlu0 %v748, 127
  %v1377 = vpop.permute.xlu0 %1376
  %1378 = vrot.lane.b32.xlu0 %v749, 127
  %v1379 = vpop.permute.xlu0 %1378
  %1380 = vrot.lane.b32.xlu0 %v750, 127
  %v1381 = vpop.permute.xlu0 %1380
  %1382 = vrot.lane.b32.xlu0 %v751, 127
  %v1383 = vpop.permute.xlu0 %1382
  %1384 = vrot.lane.b32.xlu0 %v752, 127
  %v1385 = vpop.permute.xlu0 %1384
  %1386 = vrot.lane.b32.xlu0 %v753, 127
  %v1387 = vpop.permute.xlu0 %1386
  %1388 = vrot.lane.b32.xlu0 %v754, 127
  %v1389 = vpop.permute.xlu0 %1388
  %1390 = vrot.lane.b32.xlu0 %v755, 127
  %v1391 = vpop.permute.xlu0 %1390
  %v1392 = vsel %vm222, %v1345, %v1347
  %v1393 = vsel %vm222, %v1347, %v1349
  %v1394 = vsel %vm222, %v1349, %v1351
  %v1395 = vsel %vm222, %v1353, %v1355
  %v1396 = vsel %vm222, %v1355, %v1357
  %v1397 = vsel %vm222, %v1357, %v1359
  %v1398 = vsel %vm222, %v1361, %v1363
  %v1399 = vsel %vm222, %v1363, %v1365
  %v1400 = vsel %vm222, %v1365, %v1367
  %v1401 = vsel %vm222, %v1369, %v1371
  %v1402 = vsel %vm222, %v1371, %v1373
  %v1403 = vsel %vm222, %v1373, %v1375
  %v1404 = vsel %vm222, %v1377, %v1379
  %v1405 = vsel %vm222, %v1379, %v1381
  %v1406 = vsel %vm222, %v1381, %v1383
  %v1407 = vsel %vm222, %v1385, %v1387
  %v1408 = vsel %vm222, %v1387, %v1389
  %v1409 = vsel %vm222, %v1389, %v1391
  %v1440 = vsel %vm222, %v1351, %v1345
  %v1441 = vsel %vm222, %v1359, %v1353
  %v1442 = vsel %vm222, %v1367, %v1361
  %v1443 = vsel %vm222, %v1375, %v1369
  %v1444 = vsel %vm222, %v1383, %v1377
  %v1445 = vsel %vm222, %v1391, %v1385
  %v1446 = vmul.f32 %v1392, %v235
  %v1447 = vmul.f32 %v1393, %v239
  %v1448 = vmul.f32 %v1394, %v243
  %v1449 = vmul.f32 %v1440, %v247
  %v1450 = vmul.f32 %v1395, %v235
  %v1451 = vmul.f32 %v1396, %v239
  %v1452 = vmul.f32 %v1397, %v243
  %v1453 = vmul.f32 %v1441, %v247
  %v1454 = vmul.f32 %v1398, %v235
  %v1455 = vmul.f32 %v1399, %v239
  %v1456 = vmul.f32 %v1400, %v243
  %v1457 = vmul.f32 %v1442, %v247
  %v1458 = vmul.f32 %v1401, %v235
  %v1459 = vmul.f32 %v1402, %v239
  %v1460 = vmul.f32 %v1403, %v243
  %v1461 = vmul.f32 %v1443, %v247
  %v1462 = vmul.f32 %v1404, %v235
  %v1463 = vmul.f32 %v1405, %v239
  %v1464 = vmul.f32 %v1406, %v243
  %v1465 = vmul.f32 %v1444, %v247
  %v1466 = vmul.f32 %v1407, %v235
  %v1467 = vmul.f32 %v1408, %v239
  %v1468 = vmul.f32 %v1409, %v243
  %v1469 = vmul.f32 %v1445, %v247
  %v1470 = vpack.c.bf16 %v1450, %v1446
  %v1471 = vpack.c.bf16 %v1451, %v1447
  %v1472 = vpack.c.bf16 %v1452, %v1448
  %v1473 = vpack.c.bf16 %v1453, %v1449
  %v1474 = vpack.c.bf16 %v1458, %v1454
  %v1475 = vpack.c.bf16 %v1459, %v1455
  %v1476 = vpack.c.bf16 %v1460, %v1456
  %v1477 = vpack.c.bf16 %v1461, %v1457
  %v1478 = vpack.c.bf16 %v1466, %v1462
  %v1479 = vpack.c.bf16 %v1467, %v1463
  %v1480 = vpack.c.bf16 %v1468, %v1464
  %v1481 = vpack.c.bf16 %v1469, %v1465
  %1482 = vrot.lane.b32.xlu0 %v732, 113
  %v1483 = vpop.permute.xlu0 %1482
  %1484 = vrot.lane.b32.xlu0 %v733, 113
  %v1485 = vpop.permute.xlu0 %1484
  %1486 = vrot.lane.b32.xlu0 %v734, 113
  %v1487 = vpop.permute.xlu0 %1486
  %1488 = vrot.lane.b32.xlu0 %v735, 113
  %v1489 = vpop.permute.xlu0 %1488
  %1490 = vrot.lane.b32.xlu0 %v736, 113
  %v1491 = vpop.permute.xlu0 %1490
  %1492 = vrot.lane.b32.xlu0 %v737, 113
  %v1493 = vpop.permute.xlu0 %1492
  %1494 = vrot.lane.b32.xlu0 %v738, 113
  %v1495 = vpop.permute.xlu0 %1494
  %1496 = vrot.lane.b32.xlu0 %v739, 113
  %v1497 = vpop.permute.xlu0 %1496
  %1498 = vrot.lane.b32.xlu0 %v740, 113
  %v1499 = vpop.permute.xlu0 %1498
  %1500 = vrot.lane.b32.xlu0 %v741, 113
  %v1501 = vpop.permute.xlu0 %1500
  %1502 = vrot.lane.b32.xlu0 %v742, 113
  %v1503 = vpop.permute.xlu0 %1502
  %1504 = vrot.lane.b32.xlu0 %v743, 113
  %v1505 = vpop.permute.xlu0 %1504
  %1506 = vrot.lane.b32.xlu0 %v744, 113
  %v1507 = vpop.permute.xlu0 %1506
  %1508 = vrot.lane.b32.xlu0 %v745, 113
  %v1509 = vpop.permute.xlu0 %1508
  %1510 = vrot.lane.b32.xlu0 %v746, 113
  %v1511 = vpop.permute.xlu0 %1510
  %1512 = vrot.lane.b32.xlu0 %v747, 113
  %v1513 = vpop.permute.xlu0 %1512
  %1514 = vrot.lane.b32.xlu0 %v748, 113
  %v1515 = vpop.permute.xlu0 %1514
  %1516 = vrot.lane.b32.xlu0 %v749, 113
  %v1517 = vpop.permute.xlu0 %1516
  %1518 = vrot.lane.b32.xlu0 %v750, 113
  %v1519 = vpop.permute.xlu0 %1518
  %1520 = vrot.lane.b32.xlu0 %v751, 113
  %v1521 = vpop.permute.xlu0 %1520
  %1522 = vrot.lane.b32.xlu0 %v752, 113
  %v1523 = vpop.permute.xlu0 %1522
  %1524 = vrot.lane.b32.xlu0 %v753, 113
  %v1525 = vpop.permute.xlu0 %1524
  %1526 = vrot.lane.b32.xlu0 %v754, 113
  %v1527 = vpop.permute.xlu0 %1526
  %1528 = vrot.lane.b32.xlu0 %v755, 113
  %v1529 = vpop.permute.xlu0 %1528
  %v1530 = vsel %vm264, %v1483, %v1485
  %v1531 = vsel %vm264, %v1485, %v1487
  %v1532 = vsel %vm264, %v1487, %v1489
  %v1533 = vsel %vm264, %v1491, %v1493
  %v1534 = vsel %vm264, %v1493, %v1495
  %v1535 = vsel %vm264, %v1495, %v1497
  %v1536 = vsel %vm264, %v1499, %v1501
  %v1537 = vsel %vm264, %v1501, %v1503
  %v1538 = vsel %vm264, %v1503, %v1505
  %v1539 = vsel %vm264, %v1507, %v1509
  %v1540 = vsel %vm264, %v1509, %v1511
  %v1541 = vsel %vm264, %v1511, %v1513
  %v1542 = vsel %vm264, %v1515, %v1517
  %v1543 = vsel %vm264, %v1517, %v1519
  %v1544 = vsel %vm264, %v1519, %v1521
  %v1545 = vsel %vm264, %v1523, %v1525
  %v1546 = vsel %vm264, %v1525, %v1527
  %v1547 = vsel %vm264, %v1527, %v1529
  %v1578 = vsel %vm264, %v1489, %v1483
  %v1579 = vsel %vm264, %v1497, %v1491
  %v1580 = vsel %vm264, %v1505, %v1499
  %v1581 = vsel %vm264, %v1513, %v1507
  %v1582 = vsel %vm264, %v1521, %v1515
  %v1583 = vsel %vm264, %v1529, %v1523
  %v1584 = vmul.f32 %v1530, %v277
  %v1585 = vmul.f32 %v1531, %v281
  %v1586 = vmul.f32 %v1532, %v285
  %v1587 = vmul.f32 %v1578, %v289
  %v1588 = vmul.f32 %v1533, %v277
  %v1589 = vmul.f32 %v1534, %v281
  %v1590 = vmul.f32 %v1535, %v285
  %v1591 = vmul.f32 %v1579, %v289
  %v1592 = vmul.f32 %v1536, %v277
  %v1593 = vmul.f32 %v1537, %v281
  %v1594 = vmul.f32 %v1538, %v285
  %v1595 = vmul.f32 %v1580, %v289
  %v1596 = vmul.f32 %v1539, %v277
  %v1597 = vmul.f32 %v1540, %v281
  %v1598 = vmul.f32 %v1541, %v285
  %v1599 = vmul.f32 %v1581, %v289
  %v1600 = vmul.f32 %v1542, %v277
  %v1601 = vmul.f32 %v1543, %v281
  %v1602 = vmul.f32 %v1544, %v285
  %v1603 = vmul.f32 %v1582, %v289
  %v1604 = vmul.f32 %v1545, %v277
  %v1605 = vmul.f32 %v1546, %v281
  %v1606 = vmul.f32 %v1547, %v285
  %v1607 = vmul.f32 %v1583, %v289
  %v1608 = vpack.c.bf16 %v1588, %v1584
  %v1609 = vpack.c.bf16 %v1589, %v1585
  %v1610 = vpack.c.bf16 %v1590, %v1586
  %v1611 = vpack.c.bf16 %v1591, %v1587
  %v1612 = vpack.c.bf16 %v1596, %v1592
  %v1613 = vpack.c.bf16 %v1597, %v1593
  %v1614 = vpack.c.bf16 %v1598, %v1594
  %v1615 = vpack.c.bf16 %v1599, %v1595
  %v1616 = vpack.c.bf16 %v1604, %v1600
  %v1617 = vpack.c.bf16 %v1605, %v1601
  %v1618 = vpack.c.bf16 %v1606, %v1602
  %v1619 = vpack.c.bf16 %v1607, %v1603
  %1620 = vrot.lane.b32.xlu0 %v732, 112
  %v1621 = vpop.permute.xlu0 %1620
  %1622 = vrot.lane.b32.xlu0 %v733, 112
  %v1623 = vpop.permute.xlu0 %1622
  %1624 = vrot.lane.b32.xlu0 %v734, 112
  %v1625 = vpop.permute.xlu0 %1624
  %1626 = vrot.lane.b32.xlu0 %v735, 112
  %v1627 = vpop.permute.xlu0 %1626
  %1628 = vrot.lane.b32.xlu0 %v736, 112
  %v1629 = vpop.permute.xlu0 %1628
  %1630 = vrot.lane.b32.xlu0 %v737, 112
  %v1631 = vpop.permute.xlu0 %1630
  %1632 = vrot.lane.b32.xlu0 %v738, 112
  %v1633 = vpop.permute.xlu0 %1632
  %1634 = vrot.lane.b32.xlu0 %v739, 112
  %v1635 = vpop.permute.xlu0 %1634
  %1636 = vrot.lane.b32.xlu0 %v740, 112
  %v1637 = vpop.permute.xlu0 %1636
  %1638 = vrot.lane.b32.xlu0 %v741, 112
  %v1639 = vpop.permute.xlu0 %1638
  %1640 = vrot.lane.b32.xlu0 %v742, 112
  %v1641 = vpop.permute.xlu0 %1640
  %1642 = vrot.lane.b32.xlu0 %v743, 112
  %v1643 = vpop.permute.xlu0 %1642
  %1644 = vrot.lane.b32.xlu0 %v744, 112
  %v1645 = vpop.permute.xlu0 %1644
  %1646 = vrot.lane.b32.xlu0 %v745, 112
  %v1647 = vpop.permute.xlu0 %1646
  %1648 = vrot.lane.b32.xlu0 %v746, 112
  %v1649 = vpop.permute.xlu0 %1648
  %1650 = vrot.lane.b32.xlu0 %v747, 112
  %v1651 = vpop.permute.xlu0 %1650
  %1652 = vrot.lane.b32.xlu0 %v748, 112
  %v1653 = vpop.permute.xlu0 %1652
  %1654 = vrot.lane.b32.xlu0 %v749, 112
  %v1655 = vpop.permute.xlu0 %1654
  %1656 = vrot.lane.b32.xlu0 %v750, 112
  %v1657 = vpop.permute.xlu0 %1656
  %1658 = vrot.lane.b32.xlu0 %v751, 112
  %v1659 = vpop.permute.xlu0 %1658
  %1660 = vrot.lane.b32.xlu0 %v752, 112
  %v1661 = vpop.permute.xlu0 %1660
  %1662 = vrot.lane.b32.xlu0 %v753, 112
  %v1663 = vpop.permute.xlu0 %1662
  %1664 = vrot.lane.b32.xlu0 %v754, 112
  %v1665 = vpop.permute.xlu0 %1664
  %1666 = vrot.lane.b32.xlu0 %v755, 112
  %v1667 = vpop.permute.xlu0 %1666
  %v1668 = vsel %vm306, %v1621, %v1623
  %v1669 = vsel %vm306, %v1623, %v1625
  %v1670 = vsel %vm306, %v1625, %v1627
  %v1671 = vsel %vm306, %v1629, %v1631
  %v1672 = vsel %vm306, %v1631, %v1633
  %v1673 = vsel %vm306, %v1633, %v1635
  %v1674 = vsel %vm306, %v1637, %v1639
  %v1675 = vsel %vm306, %v1639, %v1641
  %v1676 = vsel %vm306, %v1641, %v1643
  %v1677 = vsel %vm306, %v1645, %v1647
  %v1678 = vsel %vm306, %v1647, %v1649
  %v1679 = vsel %vm306, %v1649, %v1651
  %v1680 = vsel %vm306, %v1653, %v1655
  %v1681 = vsel %vm306, %v1655, %v1657
  %v1682 = vsel %vm306, %v1657, %v1659
  %v1683 = vsel %vm306, %v1661, %v1663
  %v1684 = vsel %vm306, %v1663, %v1665
  %v1685 = vsel %vm306, %v1665, %v1667
  %v1716 = vsel %vm306, %v1627, %v1621
  %v1717 = vsel %vm306, %v1635, %v1629
  %v1718 = vsel %vm306, %v1643, %v1637
  %v1719 = vsel %vm306, %v1651, %v1645
  %v1720 = vsel %vm306, %v1659, %v1653
  %v1721 = vsel %vm306, %v1667, %v1661
  %v1722 = vmul.f32 %v1668, %v319
  %v1723 = vmul.f32 %v1669, %v323
  %v1724 = vmul.f32 %v1670, %v327
  %v1725 = vmul.f32 %v1716, %v331
  %v1726 = vmul.f32 %v1671, %v319
  %v1727 = vmul.f32 %v1672, %v323
  %v1728 = vmul.f32 %v1673, %v327
  %v1729 = vmul.f32 %v1717, %v331
  %v1730 = vmul.f32 %v1674, %v319
  %v1731 = vmul.f32 %v1675, %v323
  %v1732 = vmul.f32 %v1676, %v327
  %v1733 = vmul.f32 %v1718, %v331
  %v1734 = vmul.f32 %v1677, %v319
  %v1735 = vmul.f32 %v1678, %v323
  %v1736 = vmul.f32 %v1679, %v327
  %v1737 = vmul.f32 %v1719, %v331
  %v1738 = vmul.f32 %v1680, %v319
  %v1739 = vmul.f32 %v1681, %v323
  %v1740 = vmul.f32 %v1682, %v327
  %v1741 = vmul.f32 %v1720, %v331
  %v1742 = vmul.f32 %v1683, %v319
  %v1743 = vmul.f32 %v1684, %v323
  %v1744 = vmul.f32 %v1685, %v327
  %v1745 = vmul.f32 %v1721, %v331
  %v1746 = vpack.c.bf16 %v1726, %v1722
  %v1747 = vpack.c.bf16 %v1727, %v1723
  %v1748 = vpack.c.bf16 %v1728, %v1724
  %v1749 = vpack.c.bf16 %v1729, %v1725
  %v1750 = vpack.c.bf16 %v1734, %v1730
  %v1751 = vpack.c.bf16 %v1735, %v1731
  %v1752 = vpack.c.bf16 %v1736, %v1732
  %v1753 = vpack.c.bf16 %v1737, %v1733
  %v1754 = vpack.c.bf16 %v1742, %v1738
  %v1755 = vpack.c.bf16 %v1743, %v1739
  %v1756 = vpack.c.bf16 %v1744, %v1740
  %v1757 = vpack.c.bf16 %v1745, %v1741
  %1758 = vrot.lane.b32.xlu0 %v732, 111
  %v1759 = vpop.permute.xlu0 %1758
  %1760 = vrot.lane.b32.xlu0 %v733, 111
  %v1761 = vpop.permute.xlu0 %1760
  %1762 = vrot.lane.b32.xlu0 %v734, 111
  %v1763 = vpop.permute.xlu0 %1762
  %1764 = vrot.lane.b32.xlu0 %v735, 111
  %v1765 = vpop.permute.xlu0 %1764
  %1766 = vrot.lane.b32.xlu0 %v736, 111
  %v1767 = vpop.permute.xlu0 %1766
  %1768 = vrot.lane.b32.xlu0 %v737, 111
  %v1769 = vpop.permute.xlu0 %1768
  %1770 = vrot.lane.b32.xlu0 %v738, 111
  %v1771 = vpop.permute.xlu0 %1770
  %1772 = vrot.lane.b32.xlu0 %v739, 111
  %v1773 = vpop.permute.xlu0 %1772
  %1774 = vrot.lane.b32.xlu0 %v740, 111
  %v1775 = vpop.permute.xlu0 %1774
  %1776 = vrot.lane.b32.xlu0 %v741, 111
  %v1777 = vpop.permute.xlu0 %1776
  %1778 = vrot.lane.b32.xlu0 %v742, 111
  %v1779 = vpop.permute.xlu0 %1778
  %1780 = vrot.lane.b32.xlu0 %v743, 111
  %v1781 = vpop.permute.xlu0 %1780
  %1782 = vrot.lane.b32.xlu0 %v744, 111
  %v1783 = vpop.permute.xlu0 %1782
  %1784 = vrot.lane.b32.xlu0 %v745, 111
  %v1785 = vpop.permute.xlu0 %1784
  %1786 = vrot.lane.b32.xlu0 %v746, 111
  %v1787 = vpop.permute.xlu0 %1786
  %1788 = vrot.lane.b32.xlu0 %v747, 111
  %v1789 = vpop.permute.xlu0 %1788
  %1790 = vrot.lane.b32.xlu0 %v748, 111
  %v1791 = vpop.permute.xlu0 %1790
  %1792 = vrot.lane.b32.xlu0 %v749, 111
  %v1793 = vpop.permute.xlu0 %1792
  %1794 = vrot.lane.b32.xlu0 %v750, 111
  %v1795 = vpop.permute.xlu0 %1794
  %1796 = vrot.lane.b32.xlu0 %v751, 111
  %v1797 = vpop.permute.xlu0 %1796
  %1798 = vrot.lane.b32.xlu0 %v752, 111
  %v1799 = vpop.permute.xlu0 %1798
  %1800 = vrot.lane.b32.xlu0 %v753, 111
  %v1801 = vpop.permute.xlu0 %1800
  %1802 = vrot.lane.b32.xlu0 %v754, 111
  %v1803 = vpop.permute.xlu0 %1802
  %1804 = vrot.lane.b32.xlu0 %v755, 111
  %v1805 = vpop.permute.xlu0 %1804
  %v1806 = vsel %vm348, %v1759, %v1761
  %v1807 = vsel %vm348, %v1761, %v1763
  %v1808 = vsel %vm348, %v1763, %v1765
  %v1809 = vsel %vm348, %v1767, %v1769
  %v1810 = vsel %vm348, %v1769, %v1771
  %v1811 = vsel %vm348, %v1771, %v1773
  %v1812 = vsel %vm348, %v1775, %v1777
  %v1813 = vsel %vm348, %v1777, %v1779
  %v1814 = vsel %vm348, %v1779, %v1781
  %v1815 = vsel %vm348, %v1783, %v1785
  %v1816 = vsel %vm348, %v1785, %v1787
  %v1817 = vsel %vm348, %v1787, %v1789
  %v1818 = vsel %vm348, %v1791, %v1793
  %v1819 = vsel %vm348, %v1793, %v1795
  %v1820 = vsel %vm348, %v1795, %v1797
  %v1821 = vsel %vm348, %v1799, %v1801
  %v1822 = vsel %vm348, %v1801, %v1803
  %v1823 = vsel %vm348, %v1803, %v1805
  %v1854 = vsel %vm348, %v1765, %v1759
  %v1855 = vsel %vm348, %v1773, %v1767
  %v1856 = vsel %vm348, %v1781, %v1775
  %v1857 = vsel %vm348, %v1789, %v1783
  %v1858 = vsel %vm348, %v1797, %v1791
  %v1859 = vsel %vm348, %v1805, %v1799
  %v1860 = vmul.f32 %v1806, %v361
  %v1861 = vmul.f32 %v1807, %v365
  %v1862 = vmul.f32 %v1808, %v369
  %v1863 = vmul.f32 %v1854, %v373
  %v1864 = vmul.f32 %v1809, %v361
  %v1865 = vmul.f32 %v1810, %v365
  %v1866 = vmul.f32 %v1811, %v369
  %v1867 = vmul.f32 %v1855, %v373
  %v1868 = vmul.f32 %v1812, %v361
  %v1869 = vmul.f32 %v1813, %v365
  %v1870 = vmul.f32 %v1814, %v369
  %v1871 = vmul.f32 %v1856, %v373
  %v1872 = vmul.f32 %v1815, %v361
  %v1873 = vmul.f32 %v1816, %v365
  %v1874 = vmul.f32 %v1817, %v369
  %v1875 = vmul.f32 %v1857, %v373
  %v1876 = vmul.f32 %v1818, %v361
  %v1877 = vmul.f32 %v1819, %v365
  %v1878 = vmul.f32 %v1820, %v369
  %v1879 = vmul.f32 %v1858, %v373
  %v1880 = vmul.f32 %v1821, %v361
  %v1881 = vmul.f32 %v1822, %v365
  %v1882 = vmul.f32 %v1823, %v369
  %v1883 = vmul.f32 %v1859, %v373
  %v1884 = vpack.c.bf16 %v1864, %v1860
  %v1885 = vpack.c.bf16 %v1865, %v1861
  %v1886 = vpack.c.bf16 %v1866, %v1862
  %v1887 = vpack.c.bf16 %v1867, %v1863
  %v1888 = vpack.c.bf16 %v1872, %v1868
  %v1889 = vpack.c.bf16 %v1873, %v1869
  %v1890 = vpack.c.bf16 %v1874, %v1870
  %v1891 = vpack.c.bf16 %v1875, %v1871
  %v1892 = vpack.c.bf16 %v1880, %v1876
  %v1893 = vpack.c.bf16 %v1881, %v1877
  %v1894 = vpack.c.bf16 %v1882, %v1878
  %v1895 = vpack.c.bf16 %v1883, %v1879
  %v1896 = vld [vmem:[%s4] sm:$0xff]
  %v1897 = vld [vmem:[%s4 + $0x8] sm:$0xff]
  %v1898 = vld [vmem:[%s4 + $0x10] sm:$0xff]
  %v1899 = vld [vmem:[%s4 + $0x18] sm:$0xff]
  %v1900 = vld [vmem:[%s4 + $0x20] sm:$0xff]
  %v1901 = vld [vmem:[%s4 + $0x28] sm:$0xff]
  %v1902 = vld [vmem:[%s4 + $0x30] sm:$0xff]
  %v1903 = vld [vmem:[%s4 + $0x38] sm:$0xff]
  %v1904 = vld [vmem:[%s4 + $0x40] sm:$0xff]
  %v1905 = vld [vmem:[%s4 + $0x48] sm:$0xff]
  %v1906 = vld [vmem:[%s4 + $0x50] sm:$0xff]
  %v1907 = vld [vmem:[%s4 + $0x58] sm:$0xff]
  %v1908 = vld [vmem:[%s5] sm:$0xff]
  %v1909 = vld [vmem:[%s5 + $0x8] sm:$0xff]
  %v1910 = vld [vmem:[%s5 + $0x10] sm:$0xff]
  %v1911 = vld [vmem:[%s5 + $0x18] sm:$0xff]
  %v1912 = vld [vmem:[%s5 + $0x20] sm:$0xff]
  %v1913 = vld [vmem:[%s5 + $0x28] sm:$0xff]
  %1915 = vset.pattern.permute.xlu0 0
  %1916 = vperm.xlu0 %1915, %v1908
  %v1917 = vpop.permute.xlu0 %1916
  %1920 = vset.pattern.permute.xlu0 0
  %1921 = vperm.xlu0 %1920, %v1909
  %v1922 = vpop.permute.xlu0 %1921
  %1925 = vset.pattern.permute.xlu0 0
  %1926 = vperm.xlu0 %1925, %v1910
  %v1927 = vpop.permute.xlu0 %1926
  %1930 = vset.pattern.permute.xlu0 0
  %1931 = vperm.xlu0 %1930, %v1911
  %v1932 = vpop.permute.xlu0 %1931
  %1935 = vset.pattern.permute.xlu0 0
  %1936 = vperm.xlu0 %1935, %v1912
  %v1937 = vpop.permute.xlu0 %1936
  %1940 = vset.pattern.permute.xlu0 0
  %1941 = vperm.xlu0 %1940, %v1913
  %v1942 = vpop.permute.xlu0 %1941
  %v1956 = vunpack.c.l.b16 %v1896
  %v1957 = vunpack.c.h.b16 %v1896
  %v1958 = vunpack.c.l.b16 %v1897
  %v1959 = vunpack.c.h.b16 %v1897
  %v1960 = vunpack.c.l.b16 %v1898
  %v1961 = vunpack.c.h.b16 %v1898
  %v1962 = vunpack.c.l.b16 %v1899
  %v1963 = vunpack.c.h.b16 %v1899
  %v1964 = vunpack.c.l.b16 %v1900
  %v1965 = vunpack.c.h.b16 %v1900
  %v1966 = vunpack.c.l.b16 %v1901
  %v1967 = vunpack.c.h.b16 %v1901
  %v1968 = vunpack.c.l.b16 %v1902
  %v1969 = vunpack.c.h.b16 %v1902
  %v1970 = vunpack.c.l.b16 %v1903
  %v1971 = vunpack.c.h.b16 %v1903
  %v1972 = vunpack.c.l.b16 %v1904
  %v1973 = vunpack.c.h.b16 %v1904
  %v1974 = vunpack.c.l.b16 %v1905
  %v1975 = vunpack.c.h.b16 %v1905
  %v1976 = vunpack.c.l.b16 %v1906
  %v1977 = vunpack.c.h.b16 %v1906
  %v1978 = vunpack.c.l.b16 %v1907
  %v1979 = vunpack.c.h.b16 %v1907
  %v1980 = vpack.c.b16 %v1960, %v1956
  %v1981 = vpack.c.b16 %v1961, %v1957
  %v1982 = vpack.c.b16 %v1962, %v1958
  %v1983 = vpack.c.b16 %v1963, %v1959
  %v1984 = vpack.c.b16 %v1968, %v1964
  %v1985 = vpack.c.b16 %v1969, %v1965
  %v1986 = vpack.c.b16 %v1970, %v1966
  %v1987 = vpack.c.b16 %v1971, %v1967
  %v1988 = vpack.c.b16 %v1976, %v1972
  %v1989 = vpack.c.b16 %v1977, %v1973
  %v1990 = vpack.c.b16 %v1978, %v1974
  %v1991 = vpack.c.b16 %v1979, %v1975
  %vm2001 = vcmask 392192
  %v2003 = vsel %vm2001, %v1983, 0
  %v2006 = vsel %vm2001, %v1987, 0
  %v2009 = vsel %vm2001, %v1991, 0
  %2011 = vmatprep.subr.bf16.mxu0 %v907
  %2012 = vmatpush1.bf16.msra.mxu0 %v906
  %2013 = vmatprep.subr.bf16.mxu0 %v911
  %2014 = vmatpush1.bf16.msra.mxu0 %v910
  %2015 = vmatprep.subr.bf16.mxu0 %v915
  %2016 = vmatpush1.bf16.msra.mxu0 %v914
  %2017 = vmatprep.subr.bf16.mxu0 %v1045
  %2018 = vmatpush1.bf16.msra.mxu0 %v1044
  %2019 = vmatprep.subr.bf16.mxu0 %v1049
  %2020 = vmatpush1.bf16.msra.mxu0 %v1048
  %2021 = vmatprep.subr.bf16.mxu0 %v1053
  %2022 = vmatpush1.bf16.msra.mxu0 %v1052
  %2023 = vmatprep.subr.bf16.mxu0 %v1183
  %2024 = vmatpush1.bf16.msra.mxu0 %v1182
  %2025 = vmatprep.subr.bf16.mxu0 %v1187
  %2026 = vmatpush1.bf16.msra.mxu0 %v1186
  %2027 = vmatprep.subr.bf16.mxu0 %v1191
  %2028 = vmatpush1.bf16.msra.mxu0 %v1190
  %2029 = vmatprep.subr.bf16.mxu0 %v1321
  %2030 = vmatpush1.bf16.msra.mxu0 %v1320
  %2031 = vmatprep.subr.bf16.mxu0 %v1325
  %2032 = vmatpush1.bf16.msra.mxu0 %v1324
  %2033 = vmatprep.subr.bf16.mxu0 %v1329
  %2034 = vmatpush1.bf16.msra.mxu0 %v1328
  %2035 = vmatprep.subr.bf16.mxu0 %v1333
  %2036 = vmatpush1.bf16.msra.mxu0 %v1332
  %2037 = vmatprep.subr.bf16.mxu0 %v1337
  %2038 = vmatpush1.bf16.msra.mxu0 %v1336
  %2039 = vmatprep.subr.bf16.mxu0 %v1341
  %2040 = vmatpush1.bf16.msra.mxu0 %v1340
  %2041 = vmatprep.subr.bf16.mxu0 %v1471
  %2042 = vmatpush1.bf16.msra.mxu0 %v1470
  %2043 = vmatprep.mubr.bf16.mxu0 %v1981
  %2044 = vmatmul.mubr.bf16.gmra.mrb[0].mxu0 %v1980
  %v2045 = vpop.f32.mrb[0].mxu0
  %v2046 = vadd.f32 %v1917, %v2045
  %v2047 = vpop.f32.mrb[0].mxu0
  %v2048 = vadd.f32 %v1917, %v2047
  %v2049 = vpop.f32.mrb[0].mxu0
  %v2050 = vadd.f32 %v1922, %v2049
  %v2051 = vpop.f32.mrb[0].mxu0
  %v2052 = vadd.f32 %v1922, %v2051
  %2053 = vmatprep.mubr.bf16.mxu0 %v1985
  %2054 = vmatmul.mubr.bf16.gmra.mrb[0].mxu0 %v1984
  %v2055 = vpop.f32.mrb[0].mxu0
  %v2056 = vadd.f32 %v1927, %v2055
  %v2057 = vpop.f32.mrb[0].mxu0
  %v2058 = vadd.f32 %v1927, %v2057
  %v2059 = vpop.f32.mrb[0].mxu0
  %v2060 = vadd.f32 %v1932, %v2059
  %v2061 = vpop.f32.mrb[0].mxu0
  %v2062 = vadd.f32 %v1932, %v2061
  %2063 = vmatprep.mubr.bf16.mxu0 %v1989
  %2064 = vmatmul.mubr.bf16.gmra.mrb[0].mxu0 %v1988
  %v2065 = vpop.f32.mrb[0].mxu0
  %v2066 = vadd.f32 %v1937, %v2065
  %v2067 = vpop.f32.mrb[0].mxu0
  %v2068 = vadd.f32 %v1937, %v2067
  %v2069 = vpop.f32.mrb[0].mxu0
  %v2070 = vadd.f32 %v1942, %v2069
  %v2071 = vpop.f32.mrb[0].mxu0
  %v2072 = vadd.f32 %v1942, %v2071
  %2073 = vdwg.mxu0
  %2074 = vmatprep.subr.bf16.mxu0 %v1475
  %2075 = vmatpush1.bf16.msra.mxu0 %v1474
  %2076 = vmatprep.subr.bf16.mxu0 %v1479
  %2077 = vmatpush1.bf16.msra.mxu0 %v1478
  %2078 = vmatprep.subr.bf16.mxu0 %v1609
  %2079 = vmatpush1.bf16.msra.mxu0 %v1608
  %2080 = vmatprep.subr.bf16.mxu0 %v1613
  %2081 = vmatpush1.bf16.msra.mxu0 %v1612
  %2082 = vmatprep.subr.bf16.mxu0 %v1617
  %2083 = vmatpush1.bf16.msra.mxu0 %v1616
  %2084 = vmatprep.subr.bf16.mxu0 %v1747
  %2085 = vmatpush1.bf16.msra.mxu0 %v1746
  %2086 = vmatprep.subr.bf16.mxu0 %v1751
  %2087 = vmatpush1.bf16.msra.mxu0 %v1750
  %2088 = vmatprep.subr.bf16.mxu0 %v1755
  %2089 = vmatpush1.bf16.msra.mxu0 %v1754
  %2090 = vmatprep.subr.bf16.mxu0 %v1885
  %2091 = vmatpush1.bf16.msra.mxu0 %v1884
  %2092 = vmatprep.subr.bf16.mxu0 %v1889
  %2093 = vmatpush1.bf16.msra.mxu0 %v1888
  %2094 = vmatprep.subr.bf16.mxu0 %v1893
  %2095 = vmatpush1.bf16.msra.mxu0 %v1892
  %2096 = vmatprep.subr.bf16.mxu0 0
  %2097 = vmatpush1.bf16.msra.mxu0 0
  %2098 = vmatprep.subr.bf16.mxu0 0
  %2099 = vmatpush1.bf16.msra.mxu0 0
  %2100 = vmatprep.subr.bf16.mxu0 0
  %2101 = vmatpush1.bf16.msra.mxu0 0
  %2102 = vmatprep.subr.bf16.mxu0 0
  %2103 = vmatpush1.bf16.msra.mxu0 0
  %2104 = vmatprep.subr.bf16.mxu0 0
  %2105 = vmatpush1.bf16.msra.mxu0 0
  %2106 = vmatprep.mubr.bf16.mxu0 %v2003
  %2107 = vmatmul.mubr.bf16.gmra.mrb[0].mxu0 %v1982
  %v2108 = vpop.f32.mrb[0].mxu0
  %v2109 = vadd.f32 %v2046, %v2108
  %v2110 = vpop.f32.mrb[0].mxu0
  %v2111 = vadd.f32 %v2048, %v2110
  %v2112 = vpop.f32.mrb[0].mxu0
  %v2113 = vadd.f32 %v2050, %v2112
  %v2114 = vpop.f32.mrb[0].mxu0
  %v2115 = vadd.f32 %v2052, %v2114
  %2116 = vmatprep.mubr.bf16.mxu0 %v2006
  %2117 = vmatmul.mubr.bf16.gmra.mrb[0].mxu0 %v1986
  %v2118 = vpop.f32.mrb[0].mxu0
  %v2119 = vadd.f32 %v2056, %v2118
  %v2120 = vpop.f32.mrb[0].mxu0
  %v2121 = vadd.f32 %v2058, %v2120
  %v2122 = vpop.f32.mrb[0].mxu0
  %v2123 = vadd.f32 %v2060, %v2122
  %v2124 = vpop.f32.mrb[0].mxu0
  %v2125 = vadd.f32 %v2062, %v2124
  %2126 = vmatprep.mubr.bf16.mxu0 %v2009
  %2127 = vmatmul.mubr.bf16.gmra.mrb[0].mxu0 %v1990
  %v2128 = vpop.f32.mrb[0].mxu0
  %v2129 = vadd.f32 %v2066, %v2128
  %v2130 = vpop.f32.mrb[0].mxu0
  %v2131 = vadd.f32 %v2068, %v2130
  %v2132 = vpop.f32.mrb[0].mxu0
  %v2133 = vadd.f32 %v2070, %v2132
  %v2134 = vpop.f32.mrb[0].mxu0
  %v2135 = vadd.f32 %v2072, %v2134
  %2136 = vdwg.mxu0
  %2137 = vmatprep.subr.bf16.mxu0 %v909
  %2138 = vmatpush1.bf16.msra.mxu0 %v908
  %2139 = vmatprep.subr.bf16.mxu0 %v913
  %2140 = vmatpush1.bf16.msra.mxu0 %v912
  %2141 = vmatprep.subr.bf16.mxu0 %v917
  %2142 = vmatpush1.bf16.msra.mxu0 %v916
  %2143 = vmatprep.subr.bf16.mxu0 %v1047
  %2144 = vmatpush1.bf16.msra.mxu0 %v1046
  %2145 = vmatprep.subr.bf16.mxu0 %v1051
  %2146 = vmatpush1.bf16.msra.mxu0 %v1050
  %2147 = vmatprep.subr.bf16.mxu0 %v1055
  %2148 = vmatpush1.bf16.msra.mxu0 %v1054
  %2149 = vmatprep.subr.bf16.mxu0 %v1185
  %2150 = vmatpush1.bf16.msra.mxu0 %v1184
  %2151 = vmatprep.subr.bf16.mxu0 %v1189
  %2152 = vmatpush1.bf16.msra.mxu0 %v1188
  %2153 = vmatprep.subr.bf16.mxu0 %v1193
  %2154 = vmatpush1.bf16.msra.mxu0 %v1192
  %2155 = vmatprep.subr.bf16.mxu0 %v1323
  %2156 = vmatpush1.bf16.msra.mxu0 %v1322
  %2157 = vmatprep.subr.bf16.mxu0 %v1327
  %2158 = vmatpush1.bf16.msra.mxu0 %v1326
  %2159 = vmatprep.subr.bf16.mxu0 %v1331
  %2160 = vmatpush1.bf16.msra.mxu0 %v1330
  %2161 = vmatprep.subr.bf16.mxu0 %v1335
  %2162 = vmatpush1.bf16.msra.mxu0 %v1334
  %2163 = vmatprep.subr.bf16.mxu0 %v1339
  %2164 = vmatpush1.bf16.msra.mxu0 %v1338
  %2165 = vmatprep.subr.bf16.mxu0 %v1343
  %2166 = vmatpush1.bf16.msra.mxu0 %v1342
  %2167 = vmatprep.subr.bf16.mxu0 %v1473
  %2168 = vmatpush1.bf16.msra.mxu0 %v1472
  %2169 = vmatprep.mubr.bf16.mxu0 %v1981
  %2170 = vmatmul.mubr.bf16.gmra.mrb[0].mxu0 %v1980
  %v2171 = vpop.f32.mrb[0].mxu0
  %v2172 = vadd.f32 %v1917, %v2171
  %v2173 = vpop.f32.mrb[0].mxu0
  %v2174 = vadd.f32 %v1917, %v2173
  %v2175 = vpop.f32.mrb[0].mxu0
  %v2176 = vadd.f32 %v1922, %v2175
  %v2177 = vpop.f32.mrb[0].mxu0
  %v2178 = vadd.f32 %v1922, %v2177
  %2179 = vmatprep.mubr.bf16.mxu0 %v1985
  %2180 = vmatmul.mubr.bf16.gmra.mrb[0].mxu0 %v1984
  %v2181 = vpop.f32.mrb[0].mxu0
  %v2182 = vadd.f32 %v1927, %v2181
  %v2183 = vpop.f32.mrb[0].mxu0
  %v2184 = vadd.f32 %v1927, %v2183
  %v2185 = vpop.f32.mrb[0].mxu0
  %v2186 = vadd.f32 %v1932, %v2185
  %v2187 = vpop.f32.mrb[0].mxu0
  %v2188 = vadd.f32 %v1932, %v2187
  %2189 = vmatprep.mubr.bf16.mxu0 %v1989
  %2190 = vmatmul.mubr.bf16.gmra.mrb[0].mxu0 %v1988
  %v2191 = vpop.f32.mrb[0].mxu0
  %v2192 = vadd.f32 %v1937, %v2191
  %v2193 = vpop.f32.mrb[0].mxu0
  %v2194 = vadd.f32 %v1937, %v2193
  %v2195 = vpop.f32.mrb[0].mxu0
  %v2196 = vadd.f32 %v1942, %v2195
  %v2197 = vpop.f32.mrb[0].mxu0
  %v2198 = vadd.f32 %v1942, %v2197
  %2199 = vdwg.mxu0
  %2200 = vmatprep.subr.bf16.mxu0 %v1477
  %2201 = vmatpush1.bf16.msra.mxu0 %v1476
  %2202 = vmatprep.subr.bf16.mxu0 %v1481
  %2203 = vmatpush1.bf16.msra.mxu0 %v1480
  %2204 = vmatprep.subr.bf16.mxu0 %v1611
  %2205 = vmatpush1.bf16.msra.mxu0 %v1610
  %2206 = vmatprep.subr.bf16.mxu0 %v1615
  %2207 = vmatpush1.bf16.msra.mxu0 %v1614
  %2208 = vmatprep.subr.bf16.mxu0 %v1619
  %2209 = vmatpush1.bf16.msra.mxu0 %v1618
  %2210 = vmatprep.subr.bf16.mxu0 %v1749
  %2211 = vmatpush1.bf16.msra.mxu0 %v1748
  %2212 = vmatprep.subr.bf16.mxu0 %v1753
  %2213 = vmatpush1.bf16.msra.mxu0 %v1752
  %2214 = vmatprep.subr.bf16.mxu0 %v1757
  %2215 = vmatpush1.bf16.msra.mxu0 %v1756
  %2216 = vmatprep.subr.bf16.mxu0 %v1887
  %2217 = vmatpush1.bf16.msra.mxu0 %v1886
  %2218 = vmatprep.subr.bf16.mxu0 %v1891
  %2219 = vmatpush1.bf16.msra.mxu0 %v1890
  %2220 = vmatprep.subr.bf16.mxu0 %v1895
  %2221 = vmatpush1.bf16.msra.mxu0 %v1894
  %2222 = vmatprep.subr.bf16.mxu0 0
  %2223 = vmatpush1.bf16.msra.mxu0 0
  %2224 = vmatprep.subr.bf16.mxu0 0
  %2225 = vmatpush1.bf16.msra.mxu0 0
  %2226 = vmatprep.subr.bf16.mxu0 0
  %2227 = vmatpush1.bf16.msra.mxu0 0
  %2228 = vmatprep.subr.bf16.mxu0 0
  %2229 = vmatpush1.bf16.msra.mxu0 0
  %2230 = vmatprep.subr.bf16.mxu0 0
  %2231 = vmatpush1.bf16.msra.mxu0 0
  %2232 = vmatprep.mubr.bf16.mxu0 %v2003
  %2233 = vmatmul.mubr.bf16.gmra.mrb[0].mxu0 %v1982
  %v2234 = vpop.f32.mrb[0].mxu0
  %v2235 = vadd.f32 %v2172, %v2234
  %v2236 = vpop.f32.mrb[0].mxu0
  %v2237 = vadd.f32 %v2174, %v2236
  %v2238 = vpop.f32.mrb[0].mxu0
  %v2239 = vadd.f32 %v2176, %v2238
  %v2240 = vpop.f32.mrb[0].mxu0
  %v2241 = vadd.f32 %v2178, %v2240
  %2242 = vmatprep.mubr.bf16.mxu0 %v2006
  %2243 = vmatmul.mubr.bf16.gmra.mrb[0].mxu0 %v1986
  %v2244 = vpop.f32.mrb[0].mxu0
  %v2245 = vadd.f32 %v2182, %v2244
  %v2246 = vpop.f32.mrb[0].mxu0
  %v2247 = vadd.f32 %v2184, %v2246
  %v2248 = vpop.f32.mrb[0].mxu0
  %v2249 = vadd.f32 %v2186, %v2248
  %v2250 = vpop.f32.mrb[0].mxu0
  %v2251 = vadd.f32 %v2188, %v2250
  %2252 = vmatprep.mubr.bf16.mxu0 %v2009
  %2253 = vmatmul.mubr.bf16.gmra.mrb[0].mxu0 %v1990
  %v2254 = vpop.f32.mrb[0].mxu0
  %v2255 = vadd.f32 %v2192, %v2254
  %v2256 = vpop.f32.mrb[0].mxu0
  %v2257 = vadd.f32 %v2194, %v2256
  %v2258 = vpop.f32.mrb[0].mxu0
  %v2259 = vadd.f32 %v2196, %v2258
  %v2260 = vpop.f32.mrb[0].mxu0
  %v2261 = vadd.f32 %v2198, %v2260
  %2262 = vdwg.mxu0
  %vm2263 = vcmp.ge.f32.partialorder %v2109, 0.0
  %vm2264 = vcmp.ge.f32.partialorder %v2111, 0.0
  %vm2265 = vcmp.ge.f32.partialorder %v2235, 0.0
  %vm2266 = vcmp.ge.f32.partialorder %v2237, 0.0
  %vm2267 = vcmp.ge.f32.partialorder %v2113, 0.0
  %vm2268 = vcmp.ge.f32.partialorder %v2115, 0.0
  %vm2269 = vcmp.ge.f32.partialorder %v2239, 0.0
  %vm2270 = vcmp.ge.f32.partialorder %v2241, 0.0
  %vm2271 = vcmp.ge.f32.partialorder %v2119, 0.0
  %vm2272 = vcmp.ge.f32.partialorder %v2121, 0.0
  %vm2273 = vcmp.ge.f32.partialorder %v2245, 0.0
  %vm2274 = vcmp.ge.f32.partialorder %v2247, 0.0
  %vm2275 = vcmp.ge.f32.partialorder %v2123, 0.0
  %vm2276 = vcmp.ge.f32.partialorder %v2125, 0.0
  %vm2277 = vcmp.ge.f32.partialorder %v2249, 0.0
  %vm2278 = vcmp.ge.f32.partialorder %v2251, 0.0
  %vm2279 = vcmp.ge.f32.partialorder %v2129, 0.0
  %vm2280 = vcmp.ge.f32.partialorder %v2131, 0.0
  %vm2281 = vcmp.ge.f32.partialorder %v2255, 0.0
  %vm2282 = vcmp.ge.f32.partialorder %v2257, 0.0
  %vm2283 = vcmp.ge.f32.partialorder %v2133, 0.0
  %vm2284 = vcmp.ge.f32.partialorder %v2135, 0.0
  %vm2285 = vcmp.ge.f32.partialorder %v2259, 0.0
  %vm2286 = vcmp.ge.f32.partialorder %v2261, 0.0
  %v2287 = vmul.f32 %v2109, 0.2
  %v2288 = vmul.f32 %v2111, 0.2
  %v2289 = vmul.f32 %v2235, 0.2
  %v2290 = vmul.f32 %v2237, 0.2
  %v2291 = vmul.f32 %v2113, 0.2
  %v2292 = vmul.f32 %v2115, 0.2
  %v2293 = vmul.f32 %v2239, 0.2
  %v2294 = vmul.f32 %v2241, 0.2
  %v2295 = vmul.f32 %v2119, 0.2
  %v2296 = vmul.f32 %v2121, 0.2
  %v2297 = vmul.f32 %v2245, 0.2
  %v2298 = vmul.f32 %v2247, 0.2
  %v2299 = vmul.f32 %v2123, 0.2
  %v2300 = vmul.f32 %v2125, 0.2
  %v2301 = vmul.f32 %v2249, 0.2
  %v2302 = vmul.f32 %v2251, 0.2
  %v2303 = vmul.f32 %v2129, 0.2
  %v2304 = vmul.f32 %v2131, 0.2
  %v2305 = vmul.f32 %v2255, 0.2
  %v2306 = vmul.f32 %v2257, 0.2
  %v2307 = vmul.f32 %v2133, 0.2
  %v2308 = vmul.f32 %v2135, 0.2
  %v2309 = vmul.f32 %v2259, 0.2
  %v2310 = vmul.f32 %v2261, 0.2
  %v2311 = vsel %vm2263, %v2109, %v2287
  %v2312 = vsel %vm2264, %v2111, %v2288
  %v2313 = vsel %vm2265, %v2235, %v2289
  %v2314 = vsel %vm2266, %v2237, %v2290
  %v2315 = vsel %vm2267, %v2113, %v2291
  %v2316 = vsel %vm2268, %v2115, %v2292
  %v2317 = vsel %vm2269, %v2239, %v2293
  %v2318 = vsel %vm2270, %v2241, %v2294
  %v2319 = vsel %vm2271, %v2119, %v2295
  %v2320 = vsel %vm2272, %v2121, %v2296
  %v2321 = vsel %vm2273, %v2245, %v2297
  %v2322 = vsel %vm2274, %v2247, %v2298
  %v2323 = vsel %vm2275, %v2123, %v2299
  %v2324 = vsel %vm2276, %v2125, %v2300
  %v2325 = vsel %vm2277, %v2249, %v2301
  %v2326 = vsel %vm2278, %v2251, %v2302
  %v2327 = vsel %vm2279, %v2129, %v2303
  %v2328 = vsel %vm2280, %v2131, %v2304
  %v2329 = vsel %vm2281, %v2255, %v2305
  %v2330 = vsel %vm2282, %v2257, %v2306
  %v2331 = vsel %vm2283, %v2133, %v2307
  %v2332 = vsel %vm2284, %v2135, %v2308
  %v2333 = vsel %vm2285, %v2259, %v2309
  %v2334 = vsel %vm2286, %v2261, %v2310
  %v2335 = vld [vmem:[%s6] sm:$0x3]
  %v2336 = vpack.c.bf16 %v2315, %v2311
  %v2337 = vpack.c.bf16 %v2316, %v2312
  %v2338 = vpack.c.bf16 %v2317, %v2313
  %v2339 = vpack.c.bf16 %v2318, %v2314
  %v2340 = vpack.c.bf16 %v2323, %v2319
  %v2341 = vpack.c.bf16 %v2324, %v2320
  %v2342 = vpack.c.bf16 %v2325, %v2321
  %v2343 = vpack.c.bf16 %v2326, %v2322
  %v2344 = vpack.c.bf16 %v2331, %v2327
  %v2345 = vpack.c.bf16 %v2332, %v2328
  %v2346 = vpack.c.bf16 %v2333, %v2329
  %v2347 = vpack.c.bf16 %v2334, %v2330
  %v2348 = vld [vmem:[%s7] sm:$0x7]
  %2350 = vset.pattern.permute.xlu0 0
  %2351 = vperm.xlu0 %2350, %v2348
  %v2352 = vpop.permute.xlu0 %2351
  %v2355 = vsel %vm2001, %v2335, 0
  %2357 = vmatprep.subr.bf16.mxu0 %v2337
  %2358 = vmatpush1.bf16.msra.mxu0 %v2336
  %2359 = vmatprep.subr.bf16.mxu0 %v2341
  %2360 = vmatpush1.bf16.msra.mxu0 %v2340
  %2361 = vmatprep.subr.bf16.mxu0 %v2345
  %2362 = vmatpush1.bf16.msra.mxu0 %v2344
  %2363 = vmatprep.subr.bf16.mxu0 0
  %2364 = vmatpush1.bf16.msra.mxu0 0
  %2365 = vmatprep.subr.bf16.mxu0 0
  %2366 = vmatpush1.bf16.msra.mxu0 0
  %2367 = vmatprep.subr.bf16.mxu0 0
  %2368 = vmatpush1.bf16.msra.mxu0 0
  %2369 = vmatprep.subr.bf16.mxu0 0
  %2370 = vmatpush1.bf16.msra.mxu0 0
  %2371 = vmatprep.subr.bf16.mxu0 0
  %2372 = vmatpush1.bf16.msra.mxu0 0
  %2373 = vmatprep.subr.bf16.mxu0 0
  %2374 = vmatpush1.bf16.msra.mxu0 0
  %2375 = vmatprep.subr.bf16.mxu0 0
  %2376 = vmatpush1.bf16.msra.mxu0 0
  %2377 = vmatprep.subr.bf16.mxu0 0
  %2378 = vmatpush1.bf16.msra.mxu0 0
  %2379 = vmatprep.subr.bf16.mxu0 0
  %2380 = vmatpush1.bf16.msra.mxu0 0
  %2381 = vmatprep.subr.bf16.mxu0 0
  %2382 = vmatpush1.bf16.msra.mxu0 0
  %2383 = vmatprep.subr.bf16.mxu0 0
  %2384 = vmatpush1.bf16.msra.mxu0 0
  %2385 = vmatprep.subr.bf16.mxu0 0
  %2386 = vmatpush1.bf16.msra.mxu0 0
  %2387 = vmatprep.subr.bf16.mxu0 0
  %2388 = vmatpush1.bf16.msra.mxu0 0
  %2389 = vmatprep.mubr.bf16.mxu0 0
  %2390 = vmatmul.mubr.bf16.gmra.mrb[0].mxu0 %v2355
  %v2391 = vpop.f32.mrb[0].mxu0
  %v2392 = vadd.f32 %v2352, %v2391
  %v2393 = vpop.f32.mrb[0].mxu0
  %v2394 = vadd.f32 %v2352, %v2393
  %v2395 = vpop.f32.mrb[0].mxu0
  %v2396 = vpop.f32.mrb[0].mxu0
  %2397 = vdwg.mxu0
  %2398 = vmatprep.subr.bf16.mxu0 %v2339
  %2399 = vmatpush1.bf16.msra.mxu0 %v2338
  %2400 = vmatprep.subr.bf16.mxu0 %v2343
  %2401 = vmatpush1.bf16.msra.mxu0 %v2342
  %2402 = vmatprep.subr.bf16.mxu0 %v2347
  %2403 = vmatpush1.bf16.msra.mxu0 %v2346
  %2404 = vmatprep.subr.bf16.mxu0 0
  %2405 = vmatpush1.bf16.msra.mxu0 0
  %2406 = vmatprep.subr.bf16.mxu0 0
  %2407 = vmatpush1.bf16.msra.mxu0 0
  %2408 = vmatprep.subr.bf16.mxu0 0
  %2409 = vmatpush1.bf16.msra.mxu0 0
  %2410 = vmatprep.subr.bf16.mxu0 0
  %2411 = vmatpush1.bf16.msra.mxu0 0
  %2412 = vmatprep.subr.bf16.mxu0 0
  %2413 = vmatpush1.bf16.msra.mxu0 0
  %2414 = vmatprep.subr.bf16.mxu0 0
  %2415 = vmatpush1.bf16.msra.mxu0 0
  %2416 = vmatprep.subr.bf16.mxu0 0
  %2417 = vmatpush1.bf16.msra.mxu0 0
  %2418 = vmatprep.subr.bf16.mxu0 0
  %2419 = vmatpush1.bf16.msra.mxu0 0
  %2420 = vmatprep.subr.bf16.mxu0 0
  %2421 = vmatpush1.bf16.msra.mxu0 0
  %2422 = vmatprep.subr.bf16.mxu0 0
  %2423 = vmatpush1.bf16.msra.mxu0 0
  %2424 = vmatprep.subr.bf16.mxu0 0
  %2425 = vmatpush1.bf16.msra.mxu0 0
  %2426 = vmatprep.subr.bf16.mxu0 0
  %2427 = vmatpush1.bf16.msra.mxu0 0
  %2428 = vmatprep.subr.bf16.mxu0 0
  %2429 = vmatpush1.bf16.msra.mxu0 0
  %2430 = vmatprep.mubr.bf16.mxu0 0
  %2431 = vmatmul.mubr.bf16.gmra.mrb[0].mxu0 %v2355
  %v2432 = vpop.f32.mrb[0].mxu0
  %v2433 = vadd.f32 %v2352, %v2432
  %v2434 = vpop.f32.mrb[0].mxu0
  %v2435 = vadd.f32 %v2352, %v2434
  %v2436 = vpop.f32.mrb[0].mxu0
  %v2437 = vpop.f32.mrb[0].mxu0
  %2438 = vdwg.mxu0
  %v2443 = vcombine.low %v2392, %v2394
  %v2444 = vcombine.low %v2433, %v2435
  %2447 = vst [vmem:[%s8] sm:$0x77] %v2443
  %2448 = vst [vmem:[%s8 + $0x8] sm:$0x77] %v2444
  // Predicated region
  $region34: #{denoise1_forward.1} parent=0 // pred_check
    _
  $region35: #{denoise1_forward.1} parent=0 // pred_check_branch
    %2450 = sbr.rel (0) target = $region37
  $region36: #{denoise1_forward.1} parent=0 // pred_region
    _
  $region37: #{denoise1_forward.1} parent=0 // pred_fallthru
    _
  // Predicated region
  $region38: #{denoise1_forward.1} parent=0 // pred_check
    _
  $region39: #{denoise1_forward.1} parent=0 // pred_check_branch
    %2452 = sbr.rel (0) target = $region41
  $region40: #{denoise1_forward.1} parent=0 // pred_region
    _
  $region41: #{denoise1_forward.1} parent=0 // pred_fallthru
    _

</llo_original>
